<compile_context>
chip_gen: v5e
topology: v5e:2x2
jax: 0.10.0
libtpu: 0.0.40
codegen_flags: <defaults>
</compile_context>

<pallas_src>
import functools

import jax
import jax.numpy as jnp
from jax import lax
from jax.experimental import pallas as pl
from jax.experimental.pallas import tpu as pltpu

_EPS = 1e-5


def _round_up(x, m):
    return (x + m - 1) // m * m


def _flat_geometry(H, W):
    # Flat (row-major, zero-row-halo) scratch layout:
    #   [0 .. G)           guard (never read except masked lane G-1)
    #   [G .. G+W)         top halo row  (zeroed every step)
    #   [ist .. ist+HW)    interior, ist = G + W (128-aligned)
    #   [ist+HW .. +W)     bottom halo row (zeroed every step)
    #   [.. L)             tail guard
    ist = _round_up(W + 1, 128)
    G = ist - W
    L = _round_up(G + (H + 2) * W + 1, 128)
    return ist, G, L


# ------------------------------ Pallas kernel -------------------------------
def _two_conv_kernel(x2_ref, x1_ref, mask_ref, w1_ref, b1_ref, w2_ref, b2_ref,
                     out_ref, xs_ref, ys_ref, *, H, W, G, C2):
    # x2_ref:  [1, C2, H*W] bf16      x1_ref: [1, C1, H*W] bf16  (flat NCHW)
    # mask_ref:[2, L] bf16   row0: zero where source col == W-1 (for d=-1 taps)
    #                        row1: zero where source col == 0   (for d=+1 taps)
    # w*_ref:  [9, Cout, Cr] bf16, tap-major (t = ky*3 + kx), BN scale folded
    # b*_ref:  [Cout, 1] f32  folded conv-bias + BN bias
    # out_ref: [1, Cout, H*W] f32
    # xs_ref:  [C2+C1, L] bf16 scratch (conv1 input, interior at G+W)
    # ys_ref:  [Cmid,  L] bf16 scratch (conv2 input)
    HW = H * W
    ist = G + W                                   # interior start (128-aligned)
    Cin = xs_ref.shape[0]
    Cmid = ys_ref.shape[0]

    mask_l = mask_ref[0:1, :]                     # [1, L]
    mask_r = mask_ref[1:2, :]

    def conv3x3(scr_ref, w_ref, b_ref):
        X = scr_ref[...]                          # [Cr, L] bf16
        Xl = X * mask_l                           # source col W-1 zeroed
        Xr = X * mask_r                           # source col 0    zeroed
        acc = None
        t = 0
        for dy in range(3):                       # tap order matches packing
            for d, src in ((-1, Xl), (0, X), (1, Xr)):
                s = G + dy * W + d                # static lane offset
                p = jnp.dot(w_ref[t], src[:, s:s + HW],
                            preferred_element_type=jnp.float32)
                acc = p if acc is None else acc + p
                t += 1
        return jnp.maximum(acc + b_ref[...], 0.0)  # [Cout, HW] f32

    # --- conv1 input: fused channel-concat [x2 | up(x1)] by row placement ---
    # Zero only the halo rows (+1 guard lane each side); interior is fully
    # overwritten every step; remaining guard lanes are never read unmasked.
    z1 = jnp.zeros((Cin, W + 1), xs_ref.dtype)
    xs_ref[:, ist - W - 1:ist] = z1
    xs_ref[:, ist + HW:ist + HW + W + 1] = z1
    xs_ref[0:C2, ist:ist + HW] = x2_ref[0].astype(xs_ref.dtype)
    xs_ref[C2:Cin, ist:ist + HW] = x1_ref[0].astype(xs_ref.dtype)
    y1 = conv3x3(xs_ref, w1_ref, b1_ref)          # [Cmid, HW] f32

    # --- conv2 input: intermediate with zero halo ---
    z2 = jnp.zeros((Cmid, W + 1), ys_ref.dtype)
    ys_ref[:, ist - W - 1:ist] = z2
    ys_ref[:, ist + HW:ist + HW + W + 1] = z2
    ys_ref[:, ist:ist + HW] = y1.astype(ys_ref.dtype)
    y2 = conv3x3(ys_ref, w2_ref, b2_ref)          # [Cout, HW] f32

    out_ref[0] = y2.astype(out_ref.dtype)         # lane-dense store


def two_conv_pallas(x2f, x1f, w1r, b1, w2r, b2, masks, H, W):
    N, C2, HW = x2f.shape
    C1 = x1f.shape[1]
    _, Cmid, Cin = w1r.shape
    Cout = w2r.shape[1]
    assert Cin == C2 + C1
    ist, G, L = _flat_geometry(H, W)
    assert masks.shape == (2, L)

    kernel = functools.partial(_two_conv_kernel, H=H, W=W, G=G, C2=C2)
    return pl.pallas_call(
        kernel,
        out_shape=jax.ShapeDtypeStruct((N, Cout, HW), jnp.float32),
        grid_spec=pltpu.PrefetchScalarGridSpec(
            num_scalar_prefetch=0,
            grid=(N,),
            in_specs=[
                pl.BlockSpec((1, C2, HW), lambda n: (n, 0, 0)),
                pl.BlockSpec((1, C1, HW), lambda n: (n, 0, 0)),
                pl.BlockSpec((2, L), lambda n: (0, 0)),
                pl.BlockSpec((9, Cmid, Cin), lambda n: (0, 0, 0)),
                pl.BlockSpec((Cmid, 1), lambda n: (0, 0)),
                pl.BlockSpec((9, Cout, Cmid), lambda n: (0, 0, 0)),
                pl.BlockSpec((Cout, 1), lambda n: (0, 0)),
            ],
            out_specs=pl.BlockSpec((1, Cout, HW), lambda n: (n, 0, 0)),
            scratch_shapes=[
                pltpu.VMEM((Cin, L), jnp.bfloat16),
                pltpu.VMEM((Cmid, L), jnp.bfloat16),
            ],
        ),
        compiler_params=pltpu.CompilerParams(
            dimension_semantics=("parallel",),
            vmem_limit_bytes=64 * 1024 * 1024),
    )(x2f, x1f, masks, w1r, b1, w2r, b2)


# ------------------------------ JAX glue -------------------------------------
def _interp_matrix(out_size, in_size):
    # Bilinear (align_corners=True) interpolation matrix [out_size, in_size].
    if in_size == 1:
        return jnp.ones((out_size, 1), jnp.float32)
    src = jnp.arange(out_size, dtype=jnp.float32) * (in_size - 1) / (out_size - 1)
    i0 = jnp.floor(src).astype(jnp.int32)
    i1 = jnp.minimum(i0 + 1, in_size - 1)
    w = (src - i0.astype(jnp.float32))[:, None]
    m0 = jax.nn.one_hot(i0, in_size, dtype=jnp.float32) * (1.0 - w)
    m1 = jax.nn.one_hot(i1, in_size, dtype=jnp.float32) * w
    return m0 + m1


def _bilinear_upsample_x2_matmul(x):
    # x: [N, C, H, W] -> [N, C, 2H, 2W]; two small interpolation matmuls
    # (XLA dots) instead of a gather.
    N, C, H, W = x.shape
    Uy = _interp_matrix(2 * H, H)                  # [2H, H]
    Ux = _interp_matrix(2 * W, W)                  # [2W, W]
    t = jnp.einsum('nckl,wl->nckw', x, Ux)         # column interp
    return jnp.einsum('hk,nckw->nchw', Uy, t)      # row interp


def _fold_bn(params):
    # eval-mode BatchNorm fold: y = (conv + bc - m) * s + be, s = g/sqrt(v+eps)
    s1 = params['g1'] / jnp.sqrt(params['v1'] + _EPS)
    b1 = (params['bc1'] - params['m1']) * s1 + params['be1']
    s2 = params['g2'] / jnp.sqrt(params['v2'] + _EPS)
    b2 = (params['bc2'] - params['m2']) * s2 + params['be2']
    return s1, b1, s2, b2


def _pack_conv_weight(w_hwio, scale):
    # [3,3,Cin,Cout] (+ per-Cout BN scale) -> [9, Cout, Cin] bf16, tap-major
    # (tap t = ky*3 + kx).  No pad channels: the kernel contracts over exactly
    # the real input rows.
    kh, kw, cin, cout = w_hwio.shape
    w = w_hwio * scale[None, None, None, :]        # fold BN scale into weights
    w = jnp.transpose(w, (0, 1, 3, 2)).reshape(kh * kw, cout, cin)
    return w.astype(jnp.bfloat16)


@jax.jit
def up_forward(x1, x2, params):
    N, C1 = x1.shape[0], x1.shape[1]
    C2, H, W = x2.shape[1], x2.shape[2], x2.shape[3]

    x1u = _bilinear_upsample_x2_matmul(x1)
    dY = H - x1u.shape[2]
    dX = W - x1u.shape[3]
    if dY or dX:
        x1u = jnp.pad(x1u, ((0, 0), (0, 0),
                            (dY // 2, dY - dY // 2), (dX // 2, dX - dX // 2)))

    # free reshapes (trailing-dim flatten), stays NCHW; bf16 halves HBM traffic
    x2f = x2.astype(jnp.bfloat16).reshape(N, C2, H * W)
    x1f = x1u.astype(jnp.bfloat16).reshape(N, C1, H * W)

    s1, b1, s2, b2 = _fold_bn(params)
    w1r = _pack_conv_weight(params['w1'], s1)      # [9, Cmid, C2+C1]
    w2r = _pack_conv_weight(params['w2'], s2)      # [9, Cout, Cmid]

    # source-column masks over the whole flat scratch length
    ist, G, L = _flat_geometry(H, W)
    col = jnp.mod(jnp.arange(L, dtype=jnp.int32) - G, W)
    masks = jnp.stack([(col != W - 1), (col != 0)]).astype(jnp.bfloat16)

    out = two_conv_pallas(x2f, x1f,
                          w1r, b1[:, None].astype(jnp.float32),
                          w2r, b2[:, None].astype(jnp.float32),
                          masks, H, W)
    return out.reshape(N, -1, H, W)                # free reshape, already NCHW


# --------------------------- plain-JAX reference -----------------------------
def _ref_bilinear_upsample_x2(x):
    # gather-based bilinear x2 upsample (align_corners=True), independent path
    N, C, H, W = x.shape
    Ho, Wo = 2 * H, 2 * W
    ys = jnp.arange(Ho, dtype=jnp.float32) * (H - 1) / (Ho - 1)
    xs = jnp.arange(Wo, dtype=jnp.float32) * (W - 1) / (Wo - 1)
    y0 = jnp.floor(ys).astype(jnp.int32)
    x0 = jnp.floor(xs).astype(jnp.int32)
    y1 = jnp.minimum(y0 + 1, H - 1)
    x1 = jnp.minimum(x0 + 1, W - 1)
    wy = (ys - y0.astype(jnp.float32))[None, None, :, None]
    wx = (xs - x0.astype(jnp.float32))[None, None, None, :]

    def g(yi, xi):
        return x[:, :, yi[:, None], xi[None, :]]

    return (g(y0, x0) * (1 - wy) * (1 - wx) + g(y0, x1) * (1 - wy) * wx +
            g(y1, x0) * wy * (1 - wx) + g(y1, x1) * wy * wx)


def _ref_conv_bn_relu(x, w, bconv, gamma, beta, mean, var):
    y = lax.conv_general_dilated(x, w, window_strides=(1, 1), padding='SAME',
                                 dimension_numbers=('NHWC', 'HWIO', 'NHWC'))
    y = y + bconv
    y = (y - mean) / jnp.sqrt(var + _EPS) * gamma + beta
    return jnp.maximum(y, 0.0)


def ref_up_forward(x1, x2, p):
    x1u = _ref_bilinear_upsample_x2(x1)
    dY = x2.shape[2] - x1u.shape[2]
    dX = x2.shape[3] - x1u.shape[3]
    x1u = jnp.pad(x1u, ((0, 0), (0, 0),
                        (dY // 2, dY - dY // 2), (dX // 2, dX - dX // 2)))
    x = jnp.concatenate([x2, x1u], axis=1)
    x = jnp.transpose(x, (0, 2, 3, 1))             # NHWC
    y = _ref_conv_bn_relu(x, p['w1'], p['bc1'], p['g1'], p['be1'],
                          p['m1'], p['v1'])
    y = _ref_conv_bn_relu(y, p['w2'], p['bc2'], p['g2'], p['be2'],
                          p['m2'], p['v2'])
    return jnp.transpose(y, (0, 3, 1, 2))


# ---------------------------------- main --------------------------------------
if __name__ == "__main__":
    in_channel, out_channel = 8, 4
    N, H2, W2 = 2, 16, 16                # x2 spatial; x1 is half resolution

    key = jax.random.PRNGKey(0)
    ks = jax.random.split(key, 16)

    x1 = jax.random.normal(ks[0], (N, in_channel // 2, H2 // 2, W2 // 2),
                           jnp.float32)
    x2 = jax.random.normal(ks[1], (N, in_channel // 2, H2, W2), jnp.float32)

    Cin, Cmid, Cout = in_channel, out_channel, out_channel
    params = dict(
        w1=0.2 * jax.random.normal(ks[2], (3, 3, Cin, Cmid), jnp.float32),
        bc1=0.1 * jax.random.normal(ks[3], (Cmid,), jnp.float32),
        g1=1.0 + 0.1 * jax.random.normal(ks[4], (Cmid,), jnp.float32),
        be1=0.1 * jax.random.normal(ks[5], (Cmid,), jnp.float32),
        m1=0.1 * jax.random.normal(ks[6], (Cmid,), jnp.float32),
        v1=1.0 + 0.1 * jnp.abs(jax.random.normal(ks[7], (Cmid,), jnp.float32)),
        w2=0.2 * jax.random.normal(ks[8], (3, 3, Cmid, Cout), jnp.float32),
        bc2=0.1 * jax.random.normal(ks[9], (Cout,), jnp.float32),
        g2=1.0 + 0.1 * jax.random.normal(ks[10], (Cout,), jnp.float32),
        be2=0.1 * jax.random.normal(ks[11], (Cout,), jnp.float32),
        m2=0.1 * jax.random.normal(ks[12], (Cout,), jnp.float32),
        v2=1.0 + 0.1 * jnp.abs(jax.random.normal(ks[13], (Cout,), jnp.float32)),
    )

    out = jax.block_until_ready(up_forward(x1, x2, params))
    ref = jax.block_until_ready(ref_up_forward(x1, x2, params))

    assert out.shape == (N, out_channel, H2, W2), out.shape
    assert bool(jnp.all(jnp.isfinite(out)))
    max_err = float(jnp.max(jnp.abs(out - ref)))
    # bf16 MXU operands vs f32 reference -> ~1e-2-level absolute error expected
    assert max_err < 0.15, f"max abs diff {max_err}"
    print("KERNEL_OK")
</pallas_src>

<mosaic_0001>
module attributes {stable_mosaic.version = 11 : i64} {
  func.func @_two_conv_kernel(%arg0: i32, %arg1: memref<1x4x256xbf16, #tpu.memory_space<vmem>>, %arg2: memref<1x4x256xbf16, #tpu.memory_space<vmem>>, %arg3: memref<2x512xbf16, #tpu.memory_space<vmem>>, %arg4: memref<9x4x8xbf16, #tpu.memory_space<vmem>>, %arg5: memref<4x1xf32, #tpu.memory_space<vmem>>, %arg6: memref<9x4x4xbf16, #tpu.memory_space<vmem>>, %arg7: memref<4x1xf32, #tpu.memory_space<vmem>>, %arg8: memref<1x4x256xf32, #tpu.memory_space<vmem>>, %arg9: memref<8x512xbf16, #tpu.memory_space<vmem>>, %arg10: memref<4x512xbf16, #tpu.memory_space<vmem>>) attributes {dimension_semantics = [#tpu.dimension_semantics<parallel>], iteration_bounds = array<i64: 2>, scalar_prefetch = 0 : i64, scratch_operands = 2 : i64, tpu.core_type = #tpu.core_type<tc>, window_params = [{transform_indices = @transform_0, window_bounds = array<i64: 1, 4, 256>}, {transform_indices = @transform_1, window_bounds = array<i64: 1, 4, 256>}, {pipeline_mode = #tpu.pipeline_mode<synchronous>, transform_indices = @transform_2, window_bounds = array<i64: 2, 512>}, {pipeline_mode = #tpu.pipeline_mode<synchronous>, transform_indices = @transform_3, window_bounds = array<i64: 9, 4, 8>}, {pipeline_mode = #tpu.pipeline_mode<synchronous>, transform_indices = @transform_4, window_bounds = array<i64: 4, 1>}, {pipeline_mode = #tpu.pipeline_mode<synchronous>, transform_indices = @transform_5, window_bounds = array<i64: 9, 4, 4>}, {pipeline_mode = #tpu.pipeline_mode<synchronous>, transform_indices = @transform_6, window_bounds = array<i64: 4, 1>}, {transform_indices = @transform_7, window_bounds = array<i64: 1, 4, 256>}]} {
    %c0 = arith.constant 0 : index
    %c0_0 = arith.constant 0 : index
    %0 = vector.load %arg3[%c0, %c0_0] : memref<2x512xbf16, #tpu.memory_space<vmem>>, vector<1x512xbf16>
    %c1 = arith.constant 1 : index
    %c0_1 = arith.constant 0 : index
    %1 = vector.load %arg3[%c1, %c0_1] : memref<2x512xbf16, #tpu.memory_space<vmem>>, vector<1x512xbf16>
    %cst = arith.constant 0.000000e+00 : bf16
    %2 = vector.broadcast %cst : bf16 to vector<8x17xbf16>
    %c0_2 = arith.constant 0 : index
    %c111 = arith.constant 111 : index
    %3 = vector.load %arg9[%c0_2, %c111] : memref<8x512xbf16, #tpu.memory_space<vmem>>, vector<8x17xbf16>
    tpu.vector_store %arg9[%c0_2, %c111], %2 {strides = array<i32>} : memref<8x512xbf16, #tpu.memory_space<vmem>>, vector<8x17xbf16>,
    %c0_3 = arith.constant 0 : index
    %c384 = arith.constant 384 : index
    %4 = vector.load %arg9[%c0_3, %c384] : memref<8x512xbf16, #tpu.memory_space<vmem>>, vector<8x17xbf16>
    tpu.vector_store %arg9[%c0_3, %c384], %2 {strides = array<i32>} : memref<8x512xbf16, #tpu.memory_space<vmem>>, vector<8x17xbf16>,
    %c0_4 = arith.constant 0 : index
    %c0_5 = arith.constant 0 : index
    %c0_6 = arith.constant 0 : index
    %5 = vector.load %arg1[%c0_4, %c0_5, %c0_6] : memref<1x4x256xbf16, #tpu.memory_space<vmem>>, vector<1x4x256xbf16>
    %6 = vector.shape_cast %5 : vector<1x4x256xbf16> to vector<4x256xbf16>
    %c0_7 = arith.constant 0 : index
    %c128 = arith.constant 128 : index
    %7 = vector.load %arg9[%c0_7, %c128] : memref<8x512xbf16, #tpu.memory_space<vmem>>, vector<4x256xbf16>
    tpu.vector_store %arg9[%c0_7, %c128], %6 {strides = array<i32>} : memref<8x512xbf16, #tpu.memory_space<vmem>>, vector<4x256xbf16>,
    %c0_8 = arith.constant 0 : index
    %c0_9 = arith.constant 0 : index
    %c0_10 = arith.constant 0 : index
    %8 = vector.load %arg2[%c0_8, %c0_9, %c0_10] : memref<1x4x256xbf16, #tpu.memory_space<vmem>>, vector<1x4x256xbf16>
    %9 = vector.shape_cast %8 : vector<1x4x256xbf16> to vector<4x256xbf16>
    %c4 = arith.constant 4 : index
    %c128_11 = arith.constant 128 : index
    %10 = vector.load %arg9[%c4, %c128_11] : memref<8x512xbf16, #tpu.memory_space<vmem>>, vector<4x256xbf16>
    tpu.vector_store %arg9[%c4, %c128_11], %9 {strides = array<i32>} : memref<8x512xbf16, #tpu.memory_space<vmem>>, vector<4x256xbf16>,
    %c0_12 = arith.constant 0 : index
    %c0_13 = arith.constant 0 : index
    %11 = vector.load %arg9[%c0_12, %c0_13] : memref<8x512xbf16, #tpu.memory_space<vmem>>, vector<8x512xbf16>
    %12 = vector.broadcast %0 : vector<1x512xbf16> to vector<8x512xbf16>
    %13 = arith.mulf %11, %12 : vector<8x512xbf16>
    %14 = vector.broadcast %1 : vector<1x512xbf16> to vector<8x512xbf16>
    %15 = arith.mulf %11, %14 : vector<8x512xbf16>
    %c0_14 = arith.constant 0 : index
    %c0_15 = arith.constant 0 : index
    %c0_16 = arith.constant 0 : index
    %16 = vector.load %arg4[%c0_14, %c0_15, %c0_16] : memref<9x4x8xbf16, #tpu.memory_space<vmem>>, vector<1x4x8xbf16>
    %17 = vector.shape_cast %16 : vector<1x4x8xbf16> to vector<4x8xbf16>
    %18 = vector.extract_strided_slice %13 {offsets = [0, 111], sizes = [8, 256], strides = [1, 1]} : vector<8x512xbf16> to vector<8x256xbf16>
    %cst_17 = arith.constant dense<0.000000e+00> : vector<4x256xf32>
    %19 = tpu.matmul %17, %18, %cst_17 {dimension_numbers = #tpu.dot_dimension_numbers<[1], [0], [0], [1], [0, 0, 1, 1], [], []>} : vector<4x8xbf16>, vector<8x256xbf16>, vector<4x256xf32> -> vector<4x256xf32>
    %c1_18 = arith.constant 1 : index
    %c0_19 = arith.constant 0 : index
    %c0_20 = arith.constant 0 : index
    %20 = vector.load %arg4[%c1_18, %c0_19, %c0_20] : memref<9x4x8xbf16, #tpu.memory_space<vmem>>, vector<1x4x8xbf16>
    %21 = vector.shape_cast %20 : vector<1x4x8xbf16> to vector<4x8xbf16>
    %22 = vector.extract_strided_slice %11 {offsets = [0, 112], sizes = [8, 256], strides = [1, 1]} : vector<8x512xbf16> to vector<8x256xbf16>
    %cst_21 = arith.constant dense<0.000000e+00> : vector<4x256xf32>
    %23 = tpu.matmul %21, %22, %cst_21 {dimension_numbers = #tpu.dot_dimension_numbers<[1], [0], [0], [1], [0, 0, 1, 1], [], []>} : vector<4x8xbf16>, vector<8x256xbf16>, vector<4x256xf32> -> vector<4x256xf32>
    %24 = arith.addf %19, %23 : vector<4x256xf32>
    %c2 = arith.constant 2 : index
    %c0_22 = arith.constant 0 : index
    %c0_23 = arith.constant 0 : index
    %25 = vector.load %arg4[%c2, %c0_22, %c0_23] : memref<9x4x8xbf16, #tpu.memory_space<vmem>>, vector<1x4x8xbf16>
    %26 = vector.shape_cast %25 : vector<1x4x8xbf16> to vector<4x8xbf16>
    %27 = vector.extract_strided_slice %15 {offsets = [0, 113], sizes = [8, 256], strides = [1, 1]} : vector<8x512xbf16> to vector<8x256xbf16>
    %cst_24 = arith.constant dense<0.000000e+00> : vector<4x256xf32>
    %28 = tpu.matmul %26, %27, %cst_24 {dimension_numbers = #tpu.dot_dimension_numbers<[1], [0], [0], [1], [0, 0, 1, 1], [], []>} : vector<4x8xbf16>, vector<8x256xbf16>, vector<4x256xf32> -> vector<4x256xf32>
    %29 = arith.addf %24, %28 : vector<4x256xf32>
    %c3 = arith.constant 3 : index
    %c0_25 = arith.constant 0 : index
    %c0_26 = arith.constant 0 : index
    %30 = vector.load %arg4[%c3, %c0_25, %c0_26] : memref<9x4x8xbf16, #tpu.memory_space<vmem>>, vector<1x4x8xbf16>
    %31 = vector.shape_cast %30 : vector<1x4x8xbf16> to vector<4x8xbf16>
    %32 = vector.extract_strided_slice %13 {offsets = [0, 127], sizes = [8, 256], strides = [1, 1]} : vector<8x512xbf16> to vector<8x256xbf16>
    %cst_27 = arith.constant dense<0.000000e+00> : vector<4x256xf32>
    %33 = tpu.matmul %31, %32, %cst_27 {dimension_numbers = #tpu.dot_dimension_numbers<[1], [0], [0], [1], [0, 0, 1, 1], [], []>} : vector<4x8xbf16>, vector<8x256xbf16>, vector<4x256xf32> -> vector<4x256xf32>
    %34 = arith.addf %29, %33 : vector<4x256xf32>
    %c4_28 = arith.constant 4 : index
    %c0_29 = arith.constant 0 : index
    %c0_30 = arith.constant 0 : index
    %35 = vector.load %arg4[%c4_28, %c0_29, %c0_30] : memref<9x4x8xbf16, #tpu.memory_space<vmem>>, vector<1x4x8xbf16>
    %36 = vector.shape_cast %35 : vector<1x4x8xbf16> to vector<4x8xbf16>
    %37 = vector.extract_strided_slice %11 {offsets = [0, 128], sizes = [8, 256], strides = [1, 1]} : vector<8x512xbf16> to vector<8x256xbf16>
    %cst_31 = arith.constant dense<0.000000e+00> : vector<4x256xf32>
    %38 = tpu.matmul %36, %37, %cst_31 {dimension_numbers = #tpu.dot_dimension_numbers<[1], [0], [0], [1], [0, 0, 1, 1], [], []>} : vector<4x8xbf16>, vector<8x256xbf16>, vector<4x256xf32> -> vector<4x256xf32>
    %39 = arith.addf %34, %38 : vector<4x256xf32>
    %c5 = arith.constant 5 : index
    %c0_32 = arith.constant 0 : index
    %c0_33 = arith.constant 0 : index
    %40 = vector.load %arg4[%c5, %c0_32, %c0_33] : memref<9x4x8xbf16, #tpu.memory_space<vmem>>, vector<1x4x8xbf16>
    %41 = vector.shape_cast %40 : vector<1x4x8xbf16> to vector<4x8xbf16>
    %42 = vector.extract_strided_slice %15 {offsets = [0, 129], sizes = [8, 256], strides = [1, 1]} : vector<8x512xbf16> to vector<8x256xbf16>
    %cst_34 = arith.constant dense<0.000000e+00> : vector<4x256xf32>
    %43 = tpu.matmul %41, %42, %cst_34 {dimension_numbers = #tpu.dot_dimension_numbers<[1], [0], [0], [1], [0, 0, 1, 1], [], []>} : vector<4x8xbf16>, vector<8x256xbf16>, vector<4x256xf32> -> vector<4x256xf32>
    %44 = arith.addf %39, %43 : vector<4x256xf32>
    %c6 = arith.constant 6 : index
    %c0_35 = arith.constant 0 : index
    %c0_36 = arith.constant 0 : index
    %45 = vector.load %arg4[%c6, %c0_35, %c0_36] : memref<9x4x8xbf16, #tpu.memory_space<vmem>>, vector<1x4x8xbf16>
    %46 = vector.shape_cast %45 : vector<1x4x8xbf16> to vector<4x8xbf16>
    %47 = vector.extract_strided_slice %13 {offsets = [0, 143], sizes = [8, 256], strides = [1, 1]} : vector<8x512xbf16> to vector<8x256xbf16>
    %cst_37 = arith.constant dense<0.000000e+00> : vector<4x256xf32>
    %48 = tpu.matmul %46, %47, %cst_37 {dimension_numbers = #tpu.dot_dimension_numbers<[1], [0], [0], [1], [0, 0, 1, 1], [], []>} : vector<4x8xbf16>, vector<8x256xbf16>, vector<4x256xf32> -> vector<4x256xf32>
    %49 = arith.addf %44, %48 : vector<4x256xf32>
    %c7 = arith.constant 7 : index
    %c0_38 = arith.constant 0 : index
    %c0_39 = arith.constant 0 : index
    %50 = vector.load %arg4[%c7, %c0_38, %c0_39] : memref<9x4x8xbf16, #tpu.memory_space<vmem>>, vector<1x4x8xbf16>
    %51 = vector.shape_cast %50 : vector<1x4x8xbf16> to vector<4x8xbf16>
    %52 = vector.extract_strided_slice %11 {offsets = [0, 144], sizes = [8, 256], strides = [1, 1]} : vector<8x512xbf16> to vector<8x256xbf16>
    %cst_40 = arith.constant dense<0.000000e+00> : vector<4x256xf32>
    %53 = tpu.matmul %51, %52, %cst_40 {dimension_numbers = #tpu.dot_dimension_numbers<[1], [0], [0], [1], [0, 0, 1, 1], [], []>} : vector<4x8xbf16>, vector<8x256xbf16>, vector<4x256xf32> -> vector<4x256xf32>
    %54 = arith.addf %49, %53 : vector<4x256xf32>
    %c8 = arith.constant 8 : index
    %c0_41 = arith.constant 0 : index
    %c0_42 = arith.constant 0 : index
    %55 = vector.load %arg4[%c8, %c0_41, %c0_42] : memref<9x4x8xbf16, #tpu.memory_space<vmem>>, vector<1x4x8xbf16>
    %56 = vector.shape_cast %55 : vector<1x4x8xbf16> to vector<4x8xbf16>
    %57 = vector.extract_strided_slice %15 {offsets = [0, 145], sizes = [8, 256], strides = [1, 1]} : vector<8x512xbf16> to vector<8x256xbf16>
    %cst_43 = arith.constant dense<0.000000e+00> : vector<4x256xf32>
    %58 = tpu.matmul %56, %57, %cst_43 {dimension_numbers = #tpu.dot_dimension_numbers<[1], [0], [0], [1], [0, 0, 1, 1], [], []>} : vector<4x8xbf16>, vector<8x256xbf16>, vector<4x256xf32> -> vector<4x256xf32>
    %59 = arith.addf %54, %58 : vector<4x256xf32>
    %c0_44 = arith.constant 0 : index
    %c0_45 = arith.constant 0 : index
    %60 = vector.load %arg5[%c0_44, %c0_45] : memref<4x1xf32, #tpu.memory_space<vmem>>, vector<4x1xf32>
    %61 = vector.broadcast %60 : vector<4x1xf32> to vector<4x256xf32>
    %62 = arith.addf %59, %61 : vector<4x256xf32>
    %cst_46 = arith.constant 0.000000e+00 : f32
    %63 = vector.broadcast %cst_46 : f32 to vector<4x256xf32>
    %64 = arith.maximumf %62, %63 : vector<4x256xf32>
    %cst_47 = arith.constant 0.000000e+00 : bf16
    %65 = vector.broadcast %cst_47 : bf16 to vector<4x17xbf16>
    %c0_48 = arith.constant 0 : index
    %c111_49 = arith.constant 111 : index
    %66 = vector.load %arg10[%c0_48, %c111_49] : memref<4x512xbf16, #tpu.memory_space<vmem>>, vector<4x17xbf16>
    tpu.vector_store %arg10[%c0_48, %c111_49], %65 {strides = array<i32>} : memref<4x512xbf16, #tpu.memory_space<vmem>>, vector<4x17xbf16>,
    %c0_50 = arith.constant 0 : index
    %c384_51 = arith.constant 384 : index
    %67 = vector.load %arg10[%c0_50, %c384_51] : memref<4x512xbf16, #tpu.memory_space<vmem>>, vector<4x17xbf16>
    tpu.vector_store %arg10[%c0_50, %c384_51], %65 {strides = array<i32>} : memref<4x512xbf16, #tpu.memory_space<vmem>>, vector<4x17xbf16>,
    %68 = arith.truncf %64 : vector<4x256xf32> to vector<4x256xbf16>
    %c0_52 = arith.constant 0 : index
    %c128_53 = arith.constant 128 : index
    %69 = vector.load %arg10[%c0_52, %c128_53] : memref<4x512xbf16, #tpu.memory_space<vmem>>, vector<4x256xbf16>
    tpu.vector_store %arg10[%c0_52, %c128_53], %68 {strides = array<i32>} : memref<4x512xbf16, #tpu.memory_space<vmem>>, vector<4x256xbf16>,
    %c0_54 = arith.constant 0 : index
    %c0_55 = arith.constant 0 : index
    %70 = vector.load %arg10[%c0_54, %c0_55] : memref<4x512xbf16, #tpu.memory_space<vmem>>, vector<4x512xbf16>
    %71 = vector.broadcast %0 : vector<1x512xbf16> to vector<4x512xbf16>
    %72 = arith.mulf %70, %71 : vector<4x512xbf16>
    %73 = vector.broadcast %1 : vector<1x512xbf16> to vector<4x512xbf16>
    %74 = arith.mulf %70, %73 : vector<4x512xbf16>
    %c0_56 = arith.constant 0 : index
    %c0_57 = arith.constant 0 : index
    %c0_58 = arith.constant 0 : index
    %75 = vector.load %arg6[%c0_56, %c0_57, %c0_58] : memref<9x4x4xbf16, #tpu.memory_space<vmem>>, vector<1x4x4xbf16>
    %76 = vector.shape_cast %75 : vector<1x4x4xbf16> to vector<4x4xbf16>
    %77 = vector.extract_strided_slice %72 {offsets = [0, 111], sizes = [4, 256], strides = [1, 1]} : vector<4x512xbf16> to vector<4x256xbf16>
    %cst_59 = arith.constant dense<0.000000e+00> : vector<4x256xf32>
    %78 = tpu.matmul %76, %77, %cst_59 {dimension_numbers = #tpu.dot_dimension_numbers<[1], [0], [0], [1], [0, 0, 1, 1], [], []>} : vector<4x4xbf16>, vector<4x256xbf16>, vector<4x256xf32> -> vector<4x256xf32>
    %c1_60 = arith.constant 1 : index
    %c0_61 = arith.constant 0 : index
    %c0_62 = arith.constant 0 : index
    %79 = vector.load %arg6[%c1_60, %c0_61, %c0_62] : memref<9x4x4xbf16, #tpu.memory_space<vmem>>, vector<1x4x4xbf16>
    %80 = vector.shape_cast %79 : vector<1x4x4xbf16> to vector<4x4xbf16>
    %81 = vector.extract_strided_slice %70 {offsets = [0, 112], sizes = [4, 256], strides = [1, 1]} : vector<4x512xbf16> to vector<4x256xbf16>
    %cst_63 = arith.constant dense<0.000000e+00> : vector<4x256xf32>
    %82 = tpu.matmul %80, %81, %cst_63 {dimension_numbers = #tpu.dot_dimension_numbers<[1], [0], [0], [1], [0, 0, 1, 1], [], []>} : vector<4x4xbf16>, vector<4x256xbf16>, vector<4x256xf32> -> vector<4x256xf32>
    %83 = arith.addf %78, %82 : vector<4x256xf32>
    %c2_64 = arith.constant 2 : index
    %c0_65 = arith.constant 0 : index
    %c0_66 = arith.constant 0 : index
    %84 = vector.load %arg6[%c2_64, %c0_65, %c0_66] : memref<9x4x4xbf16, #tpu.memory_space<vmem>>, vector<1x4x4xbf16>
    %85 = vector.shape_cast %84 : vector<1x4x4xbf16> to vector<4x4xbf16>
    %86 = vector.extract_strided_slice %74 {offsets = [0, 113], sizes = [4, 256], strides = [1, 1]} : vector<4x512xbf16> to vector<4x256xbf16>
    %cst_67 = arith.constant dense<0.000000e+00> : vector<4x256xf32>
    %87 = tpu.matmul %85, %86, %cst_67 {dimension_numbers = #tpu.dot_dimension_numbers<[1], [0], [0], [1], [0, 0, 1, 1], [], []>} : vector<4x4xbf16>, vector<4x256xbf16>, vector<4x256xf32> -> vector<4x256xf32>
    %88 = arith.addf %83, %87 : vector<4x256xf32>
    %c3_68 = arith.constant 3 : index
    %c0_69 = arith.constant 0 : index
    %c0_70 = arith.constant 0 : index
    %89 = vector.load %arg6[%c3_68, %c0_69, %c0_70] : memref<9x4x4xbf16, #tpu.memory_space<vmem>>, vector<1x4x4xbf16>
    %90 = vector.shape_cast %89 : vector<1x4x4xbf16> to vector<4x4xbf16>
    %91 = vector.extract_strided_slice %72 {offsets = [0, 127], sizes = [4, 256], strides = [1, 1]} : vector<4x512xbf16> to vector<4x256xbf16>
    %cst_71 = arith.constant dense<0.000000e+00> : vector<4x256xf32>
    %92 = tpu.matmul %90, %91, %cst_71 {dimension_numbers = #tpu.dot_dimension_numbers<[1], [0], [0], [1], [0, 0, 1, 1], [], []>} : vector<4x4xbf16>, vector<4x256xbf16>, vector<4x256xf32> -> vector<4x256xf32>
    %93 = arith.addf %88, %92 : vector<4x256xf32>
    %c4_72 = arith.constant 4 : index
    %c0_73 = arith.constant 0 : index
    %c0_74 = arith.constant 0 : index
    %94 = vector.load %arg6[%c4_72, %c0_73, %c0_74] : memref<9x4x4xbf16, #tpu.memory_space<vmem>>, vector<1x4x4xbf16>
    %95 = vector.shape_cast %94 : vector<1x4x4xbf16> to vector<4x4xbf16>
    %96 = vector.extract_strided_slice %70 {offsets = [0, 128], sizes = [4, 256], strides = [1, 1]} : vector<4x512xbf16> to vector<4x256xbf16>
    %cst_75 = arith.constant dense<0.000000e+00> : vector<4x256xf32>
    %97 = tpu.matmul %95, %96, %cst_75 {dimension_numbers = #tpu.dot_dimension_numbers<[1], [0], [0], [1], [0, 0, 1, 1], [], []>} : vector<4x4xbf16>, vector<4x256xbf16>, vector<4x256xf32> -> vector<4x256xf32>
    %98 = arith.addf %93, %97 : vector<4x256xf32>
    %c5_76 = arith.constant 5 : index
    %c0_77 = arith.constant 0 : index
    %c0_78 = arith.constant 0 : index
    %99 = vector.load %arg6[%c5_76, %c0_77, %c0_78] : memref<9x4x4xbf16, #tpu.memory_space<vmem>>, vector<1x4x4xbf16>
    %100 = vector.shape_cast %99 : vector<1x4x4xbf16> to vector<4x4xbf16>
    %101 = vector.extract_strided_slice %74 {offsets = [0, 129], sizes = [4, 256], strides = [1, 1]} : vector<4x512xbf16> to vector<4x256xbf16>
    %cst_79 = arith.constant dense<0.000000e+00> : vector<4x256xf32>
    %102 = tpu.matmul %100, %101, %cst_79 {dimension_numbers = #tpu.dot_dimension_numbers<[1], [0], [0], [1], [0, 0, 1, 1], [], []>} : vector<4x4xbf16>, vector<4x256xbf16>, vector<4x256xf32> -> vector<4x256xf32>
    %103 = arith.addf %98, %102 : vector<4x256xf32>
    %c6_80 = arith.constant 6 : index
    %c0_81 = arith.constant 0 : index
    %c0_82 = arith.constant 0 : index
    %104 = vector.load %arg6[%c6_80, %c0_81, %c0_82] : memref<9x4x4xbf16, #tpu.memory_space<vmem>>, vector<1x4x4xbf16>
    %105 = vector.shape_cast %104 : vector<1x4x4xbf16> to vector<4x4xbf16>
    %106 = vector.extract_strided_slice %72 {offsets = [0, 143], sizes = [4, 256], strides = [1, 1]} : vector<4x512xbf16> to vector<4x256xbf16>
    %cst_83 = arith.constant dense<0.000000e+00> : vector<4x256xf32>
    %107 = tpu.matmul %105, %106, %cst_83 {dimension_numbers = #tpu.dot_dimension_numbers<[1], [0], [0], [1], [0, 0, 1, 1], [], []>} : vector<4x4xbf16>, vector<4x256xbf16>, vector<4x256xf32> -> vector<4x256xf32>
    %108 = arith.addf %103, %107 : vector<4x256xf32>
    %c7_84 = arith.constant 7 : index
    %c0_85 = arith.constant 0 : index
    %c0_86 = arith.constant 0 : index
    %109 = vector.load %arg6[%c7_84, %c0_85, %c0_86] : memref<9x4x4xbf16, #tpu.memory_space<vmem>>, vector<1x4x4xbf16>
    %110 = vector.shape_cast %109 : vector<1x4x4xbf16> to vector<4x4xbf16>
    %111 = vector.extract_strided_slice %70 {offsets = [0, 144], sizes = [4, 256], strides = [1, 1]} : vector<4x512xbf16> to vector<4x256xbf16>
    %cst_87 = arith.constant dense<0.000000e+00> : vector<4x256xf32>
    %112 = tpu.matmul %110, %111, %cst_87 {dimension_numbers = #tpu.dot_dimension_numbers<[1], [0], [0], [1], [0, 0, 1, 1], [], []>} : vector<4x4xbf16>, vector<4x256xbf16>, vector<4x256xf32> -> vector<4x256xf32>
    %113 = arith.addf %108, %112 : vector<4x256xf32>
    %c8_88 = arith.constant 8 : index
    %c0_89 = arith.constant 0 : index
    %c0_90 = arith.constant 0 : index
    %114 = vector.load %arg6[%c8_88, %c0_89, %c0_90] : memref<9x4x4xbf16, #tpu.memory_space<vmem>>, vector<1x4x4xbf16>
    %115 = vector.shape_cast %114 : vector<1x4x4xbf16> to vector<4x4xbf16>
    %116 = vector.extract_strided_slice %74 {offsets = [0, 145], sizes = [4, 256], strides = [1, 1]} : vector<4x512xbf16> to vector<4x256xbf16>
    %cst_91 = arith.constant dense<0.000000e+00> : vector<4x256xf32>
    %117 = tpu.matmul %115, %116, %cst_91 {dimension_numbers = #tpu.dot_dimension_numbers<[1], [0], [0], [1], [0, 0, 1, 1], [], []>} : vector<4x4xbf16>, vector<4x256xbf16>, vector<4x256xf32> -> vector<4x256xf32>
    %118 = arith.addf %113, %117 : vector<4x256xf32>
    %c0_92 = arith.constant 0 : index
    %c0_93 = arith.constant 0 : index
    %119 = vector.load %arg7[%c0_92, %c0_93] : memref<4x1xf32, #tpu.memory_space<vmem>>, vector<4x1xf32>
    %120 = vector.broadcast %119 : vector<4x1xf32> to vector<4x256xf32>
    %121 = arith.addf %118, %120 : vector<4x256xf32>
    %cst_94 = arith.constant 0.000000e+00 : f32
    %122 = vector.broadcast %cst_94 : f32 to vector<4x256xf32>
    %123 = arith.maximumf %121, %122 : vector<4x256xf32>
    %c0_95 = arith.constant 0 : index
    %c0_96 = arith.constant 0 : index
    %c0_97 = arith.constant 0 : index
    %124 = vector.load %arg8[%c0_95, %c0_96, %c0_97] : memref<1x4x256xf32, #tpu.memory_space<vmem>>, vector<1x4x256xf32>
    %125 = vector.shape_cast %124 : vector<1x4x256xf32> to vector<4x256xf32>
    %126 = vector.shape_cast %123 : vector<4x256xf32> to vector<1x4x256xf32>
    tpu.vector_store %arg8[%c0_95, %c0_96, %c0_97], %126 {strides = array<i32>} : memref<1x4x256xf32, #tpu.memory_space<vmem>>, vector<1x4x256xf32>,
    return
  }
  func.func @transform_0(%arg0: i32) -> (i32, i32, i32) {
    %c0_i32 = arith.constant 0 : i32
    %c0_i32_0 = arith.constant 0 : i32
    %c0_i32_1 = arith.constant 0 : i32
    return %arg0, %c0_i32, %c0_i32_0 : i32, i32, i32
  }
  func.func @transform_1(%arg0: i32) -> (i32, i32, i32) {
    %c0_i32 = arith.constant 0 : i32
    %c0_i32_0 = arith.constant 0 : i32
    %c0_i32_1 = arith.constant 0 : i32
    return %arg0, %c0_i32, %c0_i32_0 : i32, i32, i32
  }
  func.func @transform_2(%arg0: i32) -> (i32, i32) {
    %c0_i32 = arith.constant 0 : i32
    %c0_i32_0 = arith.constant 0 : i32
    %c0_i32_1 = arith.constant 0 : i32
    return %c0_i32, %c0_i32_0 : i32, i32
  }
  func.func @transform_3(%arg0: i32) -> (i32, i32, i32) {
    %c0_i32 = arith.constant 0 : i32
    %c0_i32_0 = arith.constant 0 : i32
    %c0_i32_1 = arith.constant 0 : i32
    %c0_i32_2 = arith.constant 0 : i32
    return %c0_i32, %c0_i32_0, %c0_i32_1 : i32, i32, i32
  }
  func.func @transform_4(%arg0: i32) -> (i32, i32) {
    %c0_i32 = arith.constant 0 : i32
    %c0_i32_0 = arith.constant 0 : i32
    %c0_i32_1 = arith.constant 0 : i32
    return %c0_i32, %c0_i32_0 : i32, i32
  }
  func.func @transform_5(%arg0: i32) -> (i32, i32, i32) {
    %c0_i32 = arith.constant 0 : i32
    %c0_i32_0 = arith.constant 0 : i32
    %c0_i32_1 = arith.constant 0 : i32
    %c0_i32_2 = arith.constant 0 : i32
    return %c0_i32, %c0_i32_0, %c0_i32_1 : i32, i32, i32
  }
  func.func @transform_6(%arg0: i32) -> (i32, i32) {
    %c0_i32 = arith.constant 0 : i32
    %c0_i32_0 = arith.constant 0 : i32
    %c0_i32_1 = arith.constant 0 : i32
    return %c0_i32, %c0_i32_0 : i32, i32
  }
  func.func @transform_7(%arg0: i32) -> (i32, i32, i32) {
    %c0_i32 = arith.constant 0 : i32
    %c0_i32_0 = arith.constant 0 : i32
    %c0_i32_1 = arith.constant 0 : i32
    return %arg0, %c0_i32, %c0_i32_0 : i32, i32, i32
  }
}

</mosaic_0001>

<llo_original>
// kernel: up_forward.1
$region0: #{up_forward.1}
  #allocation0 [shape = 'u32[]', space=smem, size = 0x4, offset = 0x4, fixed_abs, tag = 'smem constant byte address 0x4 - core index']
  #allocation1 [shape = 'u32[72,128]{1,0:T(1,128)}', space=vmem, size = 0x9000, scoped, tag = 'internal scratch']
  #allocation2 [shape = 'bf16[8,512]{1,0:T(8,128)(2,1)}', space=vmem, size = 0x2000, scoped, tag = 'scratch operand']
  #allocation3 [shape = 'bf16[4,512]{1,0:T(4,128)(2,1)}', space=vmem, size = 0x1000, scoped, tag = 'scratch operand']
  %s0 = inlined_call_operand.vmem [shape: bf16[2,4,256], index: 0, kind: input, shape index: {}]
  %s1 = inlined_call_operand.vmem [shape: bf16[2,4,256], index: 1, kind: input, shape index: {}]
  %s2 = inlined_call_operand.vmem [shape: bf16[2,512], index: 2, kind: input, shape index: {}]
  %s3 = inlined_call_operand.vmem [shape: bf16[9,4,8], index: 3, kind: input, shape index: {}]
  %s4 = inlined_call_operand.vmem [shape: f32[4,1], index: 4, kind: input, shape index: {}]
  %s5 = inlined_call_operand.vmem [shape: bf16[9,4,4], index: 5, kind: input, shape index: {}]
  %s6 = inlined_call_operand.vmem [shape: f32[4,1], index: 6, kind: input, shape index: {}]
  %s7 = inlined_call_operand.vmem [shape: f32[2,4,256], index: 7, kind: output, shape index: {}]
  %s8 = sld [smem:[#allocation0]]
  $region61: #{up_forward.1} parent=0
    _
  %s10 = ssub.s32 1, %s8
  %s11 = scalar_select 0, %s10, %s8
  loop: start=0, step=1, limit=4
  $region2: #{up_forward.1} parent=0 // loop_pre_header
    _
  $region3: #{up_forward.1} parent=0 // loop_header
    %s13 = sphi 0, %s17
    %p14 = scmp.ge.s32.totalorder %s13, 4
    %s23 = sphi 0, %s25
    %s26 = sphi 0, %s23
    %s27 = sphi 0, %s26
    %s43 = sphi 0, %s27
    %s49 = sphi 0, %s51
    %s52 = sphi 0, %s49
    %s53 = sphi 0, %s52
    %s69 = sphi 0, %s53
    %s73 = sphi 0, %s73
    %s75 = sphi 0, %s73
    %s76 = sphi 0, %s75
    %s90 = sphi 0, %s76
    %s94 = sphi 0, %s94
    %s96 = sphi 0, %s94
    %s97 = sphi 0, %s96
    %s111 = sphi 0, %s97
    %s115 = sphi 0, %s115
    %s117 = sphi 0, %s115
    %s118 = sphi 0, %s117
    %s132 = sphi 0, %s118
    %s136 = sphi 0, %s136
    %s138 = sphi 0, %s136
    %s139 = sphi 0, %s138
    %s153 = sphi 0, %s139
    %s157 = sphi 0, %s157
    %s159 = sphi 0, %s157
    %s160 = sphi 0, %s159
    %s174 = sphi 0, %s160
    %s180 = sphi 0, %s182
    %s183 = sphi 0, %s180
    %s184 = sphi 0, %s183
    %s200 = sphi 0, %s184
  $region4: #{up_forward.1} parent=0 // loop_header_branch
    %16 = sbr.rel (%p14) target = $region8
  $region5: #{up_forward.1} parent=0 // loop_body
    %s18 = ssub.s32 %s13, 1
    %s19 = ssub.s32 %s13, 2
    %s20 = sadd.s32 %s13, 1
    %s21 = ssub.s32 %s13, %s20
    %p22 = scmp.eq.s32.totalorder %s21, 0
    %s24 = sadd.s32 %s23, 1
    %s25 = scalar_select %p22, %s23, %s24
    %p28 = pneg %p22
    %p29 = scmp.eq.s32.totalorder %s13, 1
    %p30 = por %p28, %p29
    %p31 = scmp.ne.s32.totalorder %s23, %s26
    %p32 = scmp.eq.s32.totalorder %s13, 0
    %p33 = por %p31, %p32
    %p34 = scmp.ne.s32.totalorder %s23, %s26
    %p35 = scmp.eq.s32.totalorder %s18, 1
    %p36 = por %p34, %p35
    %p37 = scmp.ne.s32.totalorder %s26, %s27
    %p38 = scmp.eq.s32.totalorder %s18, 0
    %p39 = por %p37, %p38
    %p40 = scmp.ne.s32.totalorder %s26, %s27
    %p41 = scmp.eq.s32.totalorder %s19, 1
    %p42 = por %p40, %p41
    %p44 = scmp.ne.s32.totalorder %s27, %s43
    %p45 = scmp.eq.s32.totalorder %s19, 0
    %p46 = por %p44, %p45
    %s47 = ssub.s32 %s13, %s20
    %p48 = scmp.eq.s32.totalorder %s47, 0
    %s50 = sadd.s32 %s49, 1
    %s51 = scalar_select %p48, %s49, %s50
    %p54 = pneg %p48
    %p55 = scmp.eq.s32.totalorder %s13, 1
    %p56 = por %p54, %p55
    %p57 = scmp.ne.s32.totalorder %s49, %s52
    %p58 = scmp.eq.s32.totalorder %s13, 0
    %p59 = por %p57, %p58
    %p60 = scmp.ne.s32.totalorder %s49, %s52
    %p61 = scmp.eq.s32.totalorder %s18, 1
    %p62 = por %p60, %p61
    %p63 = scmp.ne.s32.totalorder %s52, %s53
    %p64 = scmp.eq.s32.totalorder %s18, 0
    %p65 = por %p63, %p64
    %p66 = scmp.ne.s32.totalorder %s52, %s53
    %p67 = scmp.eq.s32.totalorder %s19, 1
    %p68 = por %p66, %p67
    %p70 = scmp.ne.s32.totalorder %s53, %s69
    %p71 = scmp.eq.s32.totalorder %s19, 0
    %p72 = por %p70, %p71
    %s74 = sadd.s32 %s73, 1
    %p77 = scmp.eq.s32.totalorder %s13, 1
    %p78 = scmp.ne.s32.totalorder %s73, %s75
    %p79 = scmp.eq.s32.totalorder %s13, 0
    %p80 = por %p78, %p79
    %p81 = scmp.ne.s32.totalorder %s73, %s75
    %p82 = scmp.eq.s32.totalorder %s18, 1
    %p83 = por %p81, %p82
    %p84 = scmp.ne.s32.totalorder %s75, %s76
    %p85 = scmp.eq.s32.totalorder %s18, 0
    %p86 = por %p84, %p85
    %p87 = scmp.ne.s32.totalorder %s75, %s76
    %p88 = scmp.eq.s32.totalorder %s19, 1
    %p89 = por %p87, %p88
    %p91 = scmp.ne.s32.totalorder %s76, %s90
    %p92 = scmp.eq.s32.totalorder %s19, 0
    %p93 = por %p91, %p92
    %s95 = sadd.s32 %s94, 1
    %p98 = scmp.eq.s32.totalorder %s13, 1
    %p99 = scmp.ne.s32.totalorder %s94, %s96
    %p100 = scmp.eq.s32.totalorder %s13, 0
    %p101 = por %p99, %p100
    %p102 = scmp.ne.s32.totalorder %s94, %s96
    %p103 = scmp.eq.s32.totalorder %s18, 1
    %p104 = por %p102, %p103
    %p105 = scmp.ne.s32.totalorder %s96, %s97
    %p106 = scmp.eq.s32.totalorder %s18, 0
    %p107 = por %p105, %p106
    %p108 = scmp.ne.s32.totalorder %s96, %s97
    %p109 = scmp.eq.s32.totalorder %s19, 1
    %p110 = por %p108, %p109
    %p112 = scmp.ne.s32.totalorder %s97, %s111
    %p113 = scmp.eq.s32.totalorder %s19, 0
    %p114 = por %p112, %p113
    %s116 = sadd.s32 %s115, 1
    %p119 = scmp.eq.s32.totalorder %s13, 1
    %p120 = scmp.ne.s32.totalorder %s115, %s117
    %p121 = scmp.eq.s32.totalorder %s13, 0
    %p122 = por %p120, %p121
    %p123 = scmp.ne.s32.totalorder %s115, %s117
    %p124 = scmp.eq.s32.totalorder %s18, 1
    %p125 = por %p123, %p124
    %p126 = scmp.ne.s32.totalorder %s117, %s118
    %p127 = scmp.eq.s32.totalorder %s18, 0
    %p128 = por %p126, %p127
    %p129 = scmp.ne.s32.totalorder %s117, %s118
    %p130 = scmp.eq.s32.totalorder %s19, 1
    %p131 = por %p129, %p130
    %p133 = scmp.ne.s32.totalorder %s118, %s132
    %p134 = scmp.eq.s32.totalorder %s19, 0
    %p135 = por %p133, %p134
    %s137 = sadd.s32 %s136, 1
    %p140 = scmp.eq.s32.totalorder %s13, 1
    %p141 = scmp.ne.s32.totalorder %s136, %s138
    %p142 = scmp.eq.s32.totalorder %s13, 0
    %p143 = por %p141, %p142
    %p144 = scmp.ne.s32.totalorder %s136, %s138
    %p145 = scmp.eq.s32.totalorder %s18, 1
    %p146 = por %p144, %p145
    %p147 = scmp.ne.s32.totalorder %s138, %s139
    %p148 = scmp.eq.s32.totalorder %s18, 0
    %p149 = por %p147, %p148
    %p150 = scmp.ne.s32.totalorder %s138, %s139
    %p151 = scmp.eq.s32.totalorder %s19, 1
    %p152 = por %p150, %p151
    %p154 = scmp.ne.s32.totalorder %s139, %s153
    %p155 = scmp.eq.s32.totalorder %s19, 0
    %p156 = por %p154, %p155
    %s158 = sadd.s32 %s157, 1
    %p161 = scmp.eq.s32.totalorder %s13, 1
    %p162 = scmp.ne.s32.totalorder %s157, %s159
    %p163 = scmp.eq.s32.totalorder %s13, 0
    %p164 = por %p162, %p163
    %p165 = scmp.ne.s32.totalorder %s157, %s159
    %p166 = scmp.eq.s32.totalorder %s18, 1
    %p167 = por %p165, %p166
    %p168 = scmp.ne.s32.totalorder %s159, %s160
    %p169 = scmp.eq.s32.totalorder %s18, 0
    %p170 = por %p168, %p169
    %p171 = scmp.ne.s32.totalorder %s159, %s160
    %p172 = scmp.eq.s32.totalorder %s19, 1
    %p173 = por %p171, %p172
    %p175 = scmp.ne.s32.totalorder %s160, %s174
    %p176 = scmp.eq.s32.totalorder %s19, 0
    %p177 = por %p175, %p176
    %s178 = ssub.s32 %s13, %s20
    %p179 = scmp.eq.s32.totalorder %s178, 0
    %s181 = sadd.s32 %s180, 1
    %s182 = scalar_select %p179, %s180, %s181
    %p185 = pneg %p179
    %p186 = scmp.eq.s32.totalorder %s13, 1
    %p187 = por %p185, %p186
    %p188 = scmp.ne.s32.totalorder %s180, %s183
    %p189 = scmp.eq.s32.totalorder %s13, 0
    %p190 = por %p188, %p189
    %p191 = scmp.ne.s32.totalorder %s180, %s183
    %p192 = scmp.eq.s32.totalorder %s18, 1
    %p193 = por %p191, %p192
    %p194 = scmp.ne.s32.totalorder %s183, %s184
    %p195 = scmp.eq.s32.totalorder %s18, 0
    %p196 = por %p194, %p195
    %p197 = scmp.ne.s32.totalorder %s183, %s184
    %p198 = scmp.eq.s32.totalorder %s19, 1
    %p199 = por %p197, %p198
    %p201 = scmp.ne.s32.totalorder %s184, %s200
    %p202 = scmp.eq.s32.totalorder %s19, 0
    %p203 = por %p201, %p202
    %p204 = scmp.le.s32.totalorder 1, %s13
    %p205 = scmp.lt.s32.totalorder %s13, 3
    %p206 = pnand %p204, %p205
    %p207 = pneg %p206
    // Predicated region
    $region9: #{up_forward.1} parent=5 // pred_check
      _
    $region10: #{up_forward.1} parent=5 // pred_check_branch
      %209 = sbr.rel (%p206) target = $region12
    $region11: #{up_forward.1} parent=5 // pred_region
      %s210 = ssub.s32 %s13, 1
      // Predicated region
      $region13: #{up_forward.1} parent=11 // pred_check
        %p211 = pneg %p86
      $region14: #{up_forward.1} parent=11 // pred_check_branch
        %213 = sbr.rel (%p211) target = $region16
      $region15: #{up_forward.1} parent=11 // pred_region
        _
      $region16: #{up_forward.1} parent=11 // pred_fallthru
        _
      // Predicated region
      $region17: #{up_forward.1} parent=11 // pred_check
        %p214 = pneg %p107
      $region18: #{up_forward.1} parent=11 // pred_check_branch
        %216 = sbr.rel (%p214) target = $region20
      $region19: #{up_forward.1} parent=11 // pred_region
        _
      $region20: #{up_forward.1} parent=11 // pred_fallthru
        _
      // Predicated region
      $region21: #{up_forward.1} parent=11 // pred_check
        %p217 = pneg %p128
      $region22: #{up_forward.1} parent=11 // pred_check_branch
        %219 = sbr.rel (%p217) target = $region24
      $region23: #{up_forward.1} parent=11 // pred_region
        _
      $region24: #{up_forward.1} parent=11 // pred_fallthru
        _
      // Predicated region
      $region25: #{up_forward.1} parent=11 // pred_check
        %p220 = pneg %p149
      $region26: #{up_forward.1} parent=11 // pred_check_branch
        %222 = sbr.rel (%p220) target = $region28
      $region27: #{up_forward.1} parent=11 // pred_region
        _
      $region28: #{up_forward.1} parent=11 // pred_fallthru
        _
      // Predicated region
      $region29: #{up_forward.1} parent=11 // pred_check
        %p223 = pneg %p170
      $region30: #{up_forward.1} parent=11 // pred_check_branch
        %225 = sbr.rel (%p223) target = $region32
      $region31: #{up_forward.1} parent=11 // pred_region
        _
      $region32: #{up_forward.1} parent=11 // pred_fallthru
        _
    $region12: #{up_forward.1} parent=5 // pred_fallthru
      _
    %p226 = scmp.lt.s32.totalorder %s13, 2
    // Predicated region
    $region33: #{up_forward.1} parent=5 // pred_check
      %p227 = pneg %p226
    $region34: #{up_forward.1} parent=5 // pred_check_branch
      %229 = sbr.rel (%p227) target = $region36
    $region35: #{up_forward.1} parent=5 // pred_region
      // Predicated region
      $region37: #{up_forward.1} parent=35 // pred_check
        %p230 = pneg %p33
      $region38: #{up_forward.1} parent=35 // pred_check_branch
        %232 = sbr.rel (%p230) target = $region40
      $region39: #{up_forward.1} parent=35 // pred_region
        %p233 = scmp.lt.s32.totalorder %s13, 1
        %s234 = scalar_select %p233, %s13, 1
        %s235 = smul.addr %s234, 2
        %s236 = smul.addr %s235, 2
        %s237 = scalar_lea.vmem %s0, %s236
      $region40: #{up_forward.1} parent=35 // pred_fallthru
        _
      // Predicated region
      $region41: #{up_forward.1} parent=35 // pred_check
        %p238 = pneg %p59
      $region42: #{up_forward.1} parent=35 // pred_check_branch
        %240 = sbr.rel (%p238) target = $region44
      $region43: #{up_forward.1} parent=35 // pred_region
        %p241 = scmp.lt.s32.totalorder %s13, 1
        %s242 = scalar_select %p241, %s13, 1
        %s243 = smul.addr %s242, 2
        %s244 = smul.addr %s243, 2
        %s245 = scalar_lea.vmem %s1, %s244
      $region44: #{up_forward.1} parent=35 // pred_fallthru
        _
    $region36: #{up_forward.1} parent=5 // pred_fallthru
      _
    %p246 = scmp.le.s32.totalorder 1, %s13
    %p247 = scmp.lt.s32.totalorder %s13, 3
    %p248 = pnand %p246, %p247
    %p249 = pneg %p248
    // Predicated region
    $region45: #{up_forward.1} parent=5 // pred_check
      _
    $region46: #{up_forward.1} parent=5 // pred_check_branch
      %251 = sbr.rel (%p248) target = $region48
    $region47: #{up_forward.1} parent=5 // pred_region
      %s252 = ssub.s32 %s13, 1
      %p253 = scmp.lt.s32.totalorder %s18, 1
      %s254 = scalar_select %p253, %s18, 1
      %s255 = smul.addr %s254, 2
      %s256 = smul.addr %s255, 2
      %s257 = scalar_lea.vmem %s0, %s256
      %p258 = pneg %p39
      %p259 = pneg %p36
      %p260 = scmp.lt.s32.totalorder %s18, 1
      %s261 = scalar_select %p260, %s18, 1
      %s262 = smul.addr %s261, 2
      %s263 = smul.addr %s262, 2
      %s264 = scalar_lea.vmem %s1, %s263
      %p265 = pneg %p65
      %p266 = pneg %p62
      %p267 = pneg %p86
      %p268 = pneg %p83
      %p269 = pneg %p107
      %p270 = pneg %p104
      %p271 = pneg %p128
      %p272 = pneg %p125
      %p273 = pneg %p149
      %p274 = pneg %p146
      %p275 = pneg %p170
      %p276 = pneg %p167
      %p277 = pneg %p196
      %p278 = pneg %p193
      %p279 = scmp.lt.s32.totalorder %s18, 1
      %s280 = scalar_select %p279, %s18, 1
      %s281 = smul.addr %s280, 2
      %s282 = smul.addr %s281, 4
      %s283 = scalar_lea.vmem %s7, %s282
      %p284 = scmp.lt.s32.totalorder %s18, 1
      %s285 = scalar_select %p284, %s18, 1
      %s286 = smul.addr %s285, 2
      %s287 = smul.addr %s286, 2
      %s288 = scalar_lea.vmem %s0, %s287
      %p289 = scmp.lt.s32.totalorder %s18, 1
      %s290 = scalar_select %p289, %s18, 1
      %s291 = smul.addr %s290, 2
      %s292 = smul.addr %s291, 2
      %s293 = scalar_lea.vmem %s1, %s292
      %p294 = scmp.lt.s32.totalorder %s18, 1
      %s295 = scalar_select %p294, %s18, 1
      %s296 = smul.addr %s295, 2
      %s297 = smul.addr %s296, 4
      %s298 = scalar_lea.vmem %s7, %s297
      %v300 = vld [vmem:[%s2] sm:$0xf]
      %vm301 = vcmask 1044344
      %302 = vst.msk [vmem:[#allocation2] sm:$0xf] %vm301, 0
      %vm303 = vcmask 134144
      %304 = vst.msk [vmem:[#allocation2 + $0xc] sm:$0xf] %vm303, 0
      %v305 = vld [vmem:[%s288] sm:$0xf]
      %307 = vst [vmem:[#allocation1] ss:$2 sm:$0xff] %v305
      %v308 = vld.sshfl [vmem:[#allocation1] sm:$0xff pattern:$0x75643120]
      %310 = vst [vmem:[#allocation2 + $0x4] sm:$0x33] %v308
      %v311 = vld [vmem:[%s293] sm:$0xf]
      %s313 = scalar_lea.vmem [#allocation1], 1
      %314 = vst [vmem:[%s313] ss:$2 sm:$0xff] %v311
      %v315 = vld.sshfl [vmem:[#allocation1] sm:$0xff pattern:$0x75643120]
      %317 = vst [vmem:[#allocation2 + $0x4] sm:$0xcc] %v315
      %v318 = vld [vmem:[#allocation2] sm:$0xff]
      %v319 = vld [vmem:[#allocation2 + $0x8] sm:$0xff]
      %321 = vst [vmem:[#allocation1] ss:$9 sm:$0xff] %v300
      %v322 = vld [vmem:[#allocation1] sm:$0xff]
      %v323 = vld [vmem:[#allocation1 + $0x9] sm:$0xff]
      %v324 = vld [vmem:[#allocation1 + $0x12] sm:$0xff]
      %v325 = vld [vmem:[#allocation1 + $0x1b] sm:$0xff]
      %v326 = vpack.i.b16 %v322, %v322
      %v328 = vperm.slane %v326, 0
      %v329 = vpack.i.b16 %v323, %v323
      %v331 = vperm.slane %v329, 0
      %v332 = vpack.i.b16 %v324, %v324
      %v334 = vperm.slane %v332, 0
      %v335 = vpack.i.b16 %v325, %v325
      %v337 = vperm.slane %v335, 0
      %v338 = vunpack.c.l.bf16 %v318
      %v339 = vunpack.c.h.bf16 %v318
      %v340 = vunpack.c.l.bf16 %v319
      %v341 = vunpack.c.h.bf16 %v319
      %v342 = vunpack.c.l.bf16 %v328
      %v343 = vunpack.c.l.bf16 %v331
      %v344 = vunpack.c.l.bf16 %v334
      %v345 = vunpack.c.l.bf16 %v337
      %v346 = vmul.f32 %v338, %v342
      %v347 = vmul.f32 %v339, %v343
      %v348 = vmul.f32 %v340, %v344
      %v349 = vmul.f32 %v341, %v345
      %v350 = vpack.c.bf16 %v347, %v346
      %v351 = vpack.c.bf16 %v349, %v348
      %352 = vst [vmem:[#allocation1] ss:$9 sm:$0xff] %v300
      %v353 = vld [vmem:[#allocation1] sm:$0xff]
      %v354 = vld [vmem:[#allocation1 + $0x9] sm:$0xff]
      %v355 = vld [vmem:[#allocation1 + $0x12] sm:$0xff]
      %v356 = vld [vmem:[#allocation1 + $0x1b] sm:$0xff]
      %v357 = vshrl.u32 %v353, 16
      %v358 = vpack.i.b16 %v357, %v357
      %v360 = vperm.slane %v358, 0
      %v361 = vshrl.u32 %v354, 16
      %v362 = vpack.i.b16 %v361, %v361
      %v364 = vperm.slane %v362, 0
      %v365 = vshrl.u32 %v355, 16
      %v366 = vpack.i.b16 %v365, %v365
      %v368 = vperm.slane %v366, 0
      %v369 = vshrl.u32 %v356, 16
      %v370 = vpack.i.b16 %v369, %v369
      %v372 = vperm.slane %v370, 0
      %v373 = vunpack.c.l.bf16 %v360
      %v374 = vunpack.c.l.bf16 %v364
      %v375 = vunpack.c.l.bf16 %v368
      %v376 = vunpack.c.l.bf16 %v372
      %v377 = vmul.f32 %v338, %v373
      %v378 = vmul.f32 %v339, %v374
      %v379 = vmul.f32 %v340, %v375
      %v380 = vmul.f32 %v341, %v376
      %v381 = vpack.c.bf16 %v378, %v377
      %v382 = vpack.c.bf16 %v380, %v379
      %v383 = vld [vmem:[%s3] sm:$0x3]
      %s384 = scalar_lea.vmem %s3, 2
      %v385 = vld [vmem:[%s384] sm:$0x3]
      %v388 = vunpack.c.l.b16 %v318
      %v389 = vunpack.c.h.b16 %v318
      %v390 = vunpack.c.l.b16 %v319
      %v391 = vpack.c.b16 %v388, %v388
      %v392 = vpack.c.b16 %v389, %v389
      %v393 = vpack.c.b16 %v390, %v390
      %394 = vrot.lane.b32.xlu0 %v391, 16
      %v395 = vpop.permute.xlu0 %394
      %396 = vrot.lane.b32.xlu0 %v392, 16
      %v397 = vpop.permute.xlu0 %396
      %398 = vrot.lane.b32.xlu0 %v393, 16
      %v399 = vpop.permute.xlu0 %398
      %vm400 = vcmask 130048
      %v401 = vsel %vm400, %v395, %v397
      %v402 = vsel %vm400, %v397, %v399
      %vm403 = vcmask 64512
      %v405 = vsel %vm403, %v385, 0
      %vm407 = vcmask 1043456
      %v409 = vsel %vm407, %v401, 0
      %v412 = vsel %vm407, %v402, 0
      %414 = vmatpush.bf16.msra.mxu0 0
      %415 = vmatpush.bf16.msra.mxu0 0
      %416 = vmatpush.bf16.msra.mxu0 0
      %417 = vmatpush.bf16.msra.mxu0 0
      %418 = vmatpush.bf16.msra.mxu0 0
      %419 = vmatpush.bf16.msra.mxu0 0
      %420 = vmatpush.bf16.msra.mxu0 0
      %421 = vmatpush.bf16.msra.mxu0 %v409
      %422 = vmatmul.bf16.gmra.mxu0 %v405
      %v423 = vpop.f32.mrf.mxu0
      %v424 = vadd.f32 0.0, %v423
      %v425 = vpop.f32.mrf.mxu0
      %426 = vdwg.mxu0
      %427 = vmatpush.bf16.msra.mxu0 0
      %428 = vmatpush.bf16.msra.mxu0 0
      %429 = vmatpush.bf16.msra.mxu0 0
      %430 = vmatpush.bf16.msra.mxu0 0
      %431 = vmatpush.bf16.msra.mxu0 0
      %432 = vmatpush.bf16.msra.mxu0 0
      %433 = vmatpush.bf16.msra.mxu0 0
      %434 = vmatpush.bf16.msra.mxu0 %v412
      %435 = vmatmul.bf16.gmra.mxu0 %v405
      %v436 = vpop.f32.mrf.mxu0
      %v437 = vadd.f32 0.0, %v436
      %v438 = vpop.f32.mrf.mxu0
      %439 = vdwg.mxu0
      %v442 = vunpack.c.l.b16 %v350
      %v443 = vunpack.c.h.b16 %v350
      %v444 = vunpack.c.l.b16 %v351
      %v445 = vpack.c.b16 %v442, %v442
      %v446 = vpack.c.b16 %v443, %v443
      %v447 = vpack.c.b16 %v444, %v444
      %448 = vrot.lane.b32.xlu0 %v445, 17
      %v449 = vpop.permute.xlu0 %448
      %450 = vrot.lane.b32.xlu0 %v446, 17
      %v451 = vpop.permute.xlu0 %450
      %452 = vrot.lane.b32.xlu0 %v447, 17
      %v453 = vpop.permute.xlu0 %452
      %vm454 = vcmask 138240
      %v455 = vsel %vm454, %v449, %v451
      %v456 = vsel %vm454, %v451, %v453
      %v458 = vsel %vm403, %v383, 0
      %v461 = vsel %vm407, %v455, 0
      %v464 = vsel %vm407, %v456, 0
      %466 = vmatpush.bf16.msra.mxu0 0
      %467 = vmatpush.bf16.msra.mxu0 0
      %468 = vmatpush.bf16.msra.mxu0 0
      %469 = vmatpush.bf16.msra.mxu0 0
      %470 = vmatpush.bf16.msra.mxu0 0
      %471 = vmatpush.bf16.msra.mxu0 0
      %472 = vmatpush.bf16.msra.mxu0 0
      %473 = vmatpush.bf16.msra.mxu0 %v461
      %474 = vmatmul.bf16.gmra.mxu0 %v458
      %v475 = vpop.f32.mrf.mxu0
      %v476 = vadd.f32 %v424, %v475
      %v477 = vpop.f32.mrf.mxu0
      %478 = vdwg.mxu0
      %479 = vmatpush.bf16.msra.mxu0 0
      %480 = vmatpush.bf16.msra.mxu0 0
      %481 = vmatpush.bf16.msra.mxu0 0
      %482 = vmatpush.bf16.msra.mxu0 0
      %483 = vmatpush.bf16.msra.mxu0 0
      %484 = vmatpush.bf16.msra.mxu0 0
      %485 = vmatpush.bf16.msra.mxu0 0
      %486 = vmatpush.bf16.msra.mxu0 %v464
      %487 = vmatmul.bf16.gmra.mxu0 %v458
      %v488 = vpop.f32.mrf.mxu0
      %v489 = vadd.f32 %v437, %v488
      %v490 = vpop.f32.mrf.mxu0
      %491 = vdwg.mxu0
      %s492 = scalar_lea.vmem %s3, 4
      %v493 = vld [vmem:[%s492] sm:$0x3]
      %v496 = vunpack.c.l.b16 %v381
      %v497 = vunpack.c.h.b16 %v381
      %v498 = vunpack.c.l.b16 %v382
      %v499 = vpack.c.b16 %v496, %v496
      %v500 = vpack.c.b16 %v497, %v497
      %v501 = vpack.c.b16 %v498, %v498
      %502 = vrot.lane.b32.xlu0 %v499, 15
      %v503 = vpop.permute.xlu0 %502
      %504 = vrot.lane.b32.xlu0 %v500, 15
      %v505 = vpop.permute.xlu0 %504
      %506 = vrot.lane.b32.xlu0 %v501, 15
      %v507 = vpop.permute.xlu0 %506
      %vm508 = vcmask 121856
      %v509 = vsel %vm508, %v503, %v505
      %v510 = vsel %vm508, %v505, %v507
      %v512 = vsel %vm403, %v493, 0
      %v515 = vsel %vm407, %v509, 0
      %v518 = vsel %vm407, %v510, 0
      %520 = vmatpush.bf16.msra.mxu0 0
      %521 = vmatpush.bf16.msra.mxu0 0
      %522 = vmatpush.bf16.msra.mxu0 0
      %523 = vmatpush.bf16.msra.mxu0 0
      %524 = vmatpush.bf16.msra.mxu0 0
      %525 = vmatpush.bf16.msra.mxu0 0
      %526 = vmatpush.bf16.msra.mxu0 0
      %527 = vmatpush.bf16.msra.mxu0 %v515
      %528 = vmatmul.bf16.gmra.mxu0 %v512
      %v529 = vpop.f32.mrf.mxu0
      %v530 = vadd.f32 0.0, %v529
      %v531 = vpop.f32.mrf.mxu0
      %532 = vdwg.mxu0
      %533 = vmatpush.bf16.msra.mxu0 0
      %534 = vmatpush.bf16.msra.mxu0 0
      %535 = vmatpush.bf16.msra.mxu0 0
      %536 = vmatpush.bf16.msra.mxu0 0
      %537 = vmatpush.bf16.msra.mxu0 0
      %538 = vmatpush.bf16.msra.mxu0 0
      %539 = vmatpush.bf16.msra.mxu0 0
      %540 = vmatpush.bf16.msra.mxu0 %v518
      %541 = vmatmul.bf16.gmra.mxu0 %v512
      %v542 = vpop.f32.mrf.mxu0
      %v543 = vadd.f32 0.0, %v542
      %v544 = vpop.f32.mrf.mxu0
      %545 = vdwg.mxu0
      %v546 = vadd.f32 %v476, %v530
      %v547 = vadd.f32 %v489, %v543
      %s548 = scalar_lea.vmem %s3, 6
      %v549 = vld [vmem:[%s548] sm:$0x3]
      %550 = vrot.lane.b32.xlu0 %v445, 1
      %v551 = vpop.permute.xlu0 %550
      %552 = vrot.lane.b32.xlu0 %v446, 1
      %v553 = vpop.permute.xlu0 %552
      %554 = vrot.lane.b32.xlu0 %v447, 1
      %v555 = vpop.permute.xlu0 %554
      %vm556 = vcmask 7168
      %v557 = vsel %vm556, %v551, %v553
      %v558 = vsel %vm556, %v553, %v555
      %v560 = vsel %vm403, %v549, 0
      %v563 = vsel %vm407, %v557, 0
      %v566 = vsel %vm407, %v558, 0
      %568 = vmatpush.bf16.msra.mxu0 0
      %569 = vmatpush.bf16.msra.mxu0 0
      %570 = vmatpush.bf16.msra.mxu0 0
      %571 = vmatpush.bf16.msra.mxu0 0
      %572 = vmatpush.bf16.msra.mxu0 0
      %573 = vmatpush.bf16.msra.mxu0 0
      %574 = vmatpush.bf16.msra.mxu0 0
      %575 = vmatpush.bf16.msra.mxu0 %v563
      %576 = vmatmul.bf16.gmra.mxu0 %v560
      %v577 = vpop.f32.mrf.mxu0
      %v578 = vadd.f32 0.0, %v577
      %v579 = vpop.f32.mrf.mxu0
      %580 = vdwg.mxu0
      %581 = vmatpush.bf16.msra.mxu0 0
      %582 = vmatpush.bf16.msra.mxu0 0
      %583 = vmatpush.bf16.msra.mxu0 0
      %584 = vmatpush.bf16.msra.mxu0 0
      %585 = vmatpush.bf16.msra.mxu0 0
      %586 = vmatpush.bf16.msra.mxu0 0
      %587 = vmatpush.bf16.msra.mxu0 0
      %588 = vmatpush.bf16.msra.mxu0 %v566
      %589 = vmatmul.bf16.gmra.mxu0 %v560
      %v590 = vpop.f32.mrf.mxu0
      %v591 = vadd.f32 0.0, %v590
      %v592 = vpop.f32.mrf.mxu0
      %593 = vdwg.mxu0
      %v594 = vadd.f32 %v546, %v578
      %v595 = vadd.f32 %v547, %v591
      %s596 = scalar_lea.vmem %s3, 8
      %v597 = vld [vmem:[%s596] sm:$0x3]
      %v599 = vsel %vm403, %v597, 0
      %v602 = vsel %vm407, %v392, 0
      %v605 = vsel %vm407, %v393, 0
      %607 = vmatpush.bf16.msra.mxu0 0
      %608 = vmatpush.bf16.msra.mxu0 0
      %609 = vmatpush.bf16.msra.mxu0 0
      %610 = vmatpush.bf16.msra.mxu0 0
      %611 = vmatpush.bf16.msra.mxu0 0
      %612 = vmatpush.bf16.msra.mxu0 0
      %613 = vmatpush.bf16.msra.mxu0 0
      %614 = vmatpush.bf16.msra.mxu0 %v602
      %615 = vmatmul.bf16.gmra.mxu0 %v599
      %v616 = vpop.f32.mrf.mxu0
      %v617 = vadd.f32 0.0, %v616
      %v618 = vpop.f32.mrf.mxu0
      %619 = vdwg.mxu0
      %620 = vmatpush.bf16.msra.mxu0 0
      %621 = vmatpush.bf16.msra.mxu0 0
      %622 = vmatpush.bf16.msra.mxu0 0
      %623 = vmatpush.bf16.msra.mxu0 0
      %624 = vmatpush.bf16.msra.mxu0 0
      %625 = vmatpush.bf16.msra.mxu0 0
      %626 = vmatpush.bf16.msra.mxu0 0
      %627 = vmatpush.bf16.msra.mxu0 %v605
      %628 = vmatmul.bf16.gmra.mxu0 %v599
      %v629 = vpop.f32.mrf.mxu0
      %v630 = vadd.f32 0.0, %v629
      %v631 = vpop.f32.mrf.mxu0
      %632 = vdwg.mxu0
      %v633 = vadd.f32 %v594, %v617
      %v634 = vadd.f32 %v595, %v630
      %s635 = scalar_lea.vmem %s3, 10
      %v636 = vld [vmem:[%s635] sm:$0x3]
      %v637 = vunpack.c.h.b16 %v382
      %v638 = vpack.c.b16 %v637, %v637
      %639 = vrot.lane.b32.xlu0 %v500, 127
      %v640 = vpop.permute.xlu0 %639
      %641 = vrot.lane.b32.xlu0 %v501, 127
      %v642 = vpop.permute.xlu0 %641
      %643 = vrot.lane.b32.xlu0 %v638, 127
      %v644 = vpop.permute.xlu0 %643
      %vm645 = vcmask 1039360
      %v646 = vsel %vm645, %v640, %v642
      %v647 = vsel %vm645, %v642, %v644
      %v649 = vsel %vm403, %v636, 0
      %v652 = vsel %vm407, %v646, 0
      %v655 = vsel %vm407, %v647, 0
      %657 = vmatpush.bf16.msra.mxu0 0
      %658 = vmatpush.bf16.msra.mxu0 0
      %659 = vmatpush.bf16.msra.mxu0 0
      %660 = vmatpush.bf16.msra.mxu0 0
      %661 = vmatpush.bf16.msra.mxu0 0
      %662 = vmatpush.bf16.msra.mxu0 0
      %663 = vmatpush.bf16.msra.mxu0 0
      %664 = vmatpush.bf16.msra.mxu0 %v652
      %665 = vmatmul.bf16.gmra.mxu0 %v649
      %v666 = vpop.f32.mrf.mxu0
      %v667 = vadd.f32 0.0, %v666
      %v668 = vpop.f32.mrf.mxu0
      %669 = vdwg.mxu0
      %670 = vmatpush.bf16.msra.mxu0 0
      %671 = vmatpush.bf16.msra.mxu0 0
      %672 = vmatpush.bf16.msra.mxu0 0
      %673 = vmatpush.bf16.msra.mxu0 0
      %674 = vmatpush.bf16.msra.mxu0 0
      %675 = vmatpush.bf16.msra.mxu0 0
      %676 = vmatpush.bf16.msra.mxu0 0
      %677 = vmatpush.bf16.msra.mxu0 %v655
      %678 = vmatmul.bf16.gmra.mxu0 %v649
      %v679 = vpop.f32.mrf.mxu0
      %v680 = vadd.f32 0.0, %v679
      %v681 = vpop.f32.mrf.mxu0
      %682 = vdwg.mxu0
      %v683 = vadd.f32 %v633, %v667
      %v684 = vadd.f32 %v634, %v680
      %s685 = scalar_lea.vmem %s3, 12
      %v686 = vld [vmem:[%s685] sm:$0x3]
      %v687 = vunpack.c.h.b16 %v351
      %v688 = vpack.c.b16 %v687, %v687
      %689 = vrot.lane.b32.xlu0 %v446, 113
      %v690 = vpop.permute.xlu0 %689
      %691 = vrot.lane.b32.xlu0 %v447, 113
      %v692 = vpop.permute.xlu0 %691
      %693 = vrot.lane.b32.xlu0 %v688, 113
      %v694 = vpop.permute.xlu0 %693
      %vm695 = vcmask 924672
      %v696 = vsel %vm695, %v690, %v692
      %v697 = vsel %vm695, %v692, %v694
      %v699 = vsel %vm403, %v686, 0
      %v702 = vsel %vm407, %v696, 0
      %v705 = vsel %vm407, %v697, 0
      %707 = vmatpush.bf16.msra.mxu0 0
      %708 = vmatpush.bf16.msra.mxu0 0
      %709 = vmatpush.bf16.msra.mxu0 0
      %710 = vmatpush.bf16.msra.mxu0 0
      %711 = vmatpush.bf16.msra.mxu0 0
      %712 = vmatpush.bf16.msra.mxu0 0
      %713 = vmatpush.bf16.msra.mxu0 0
      %714 = vmatpush.bf16.msra.mxu0 %v702
      %715 = vmatmul.bf16.gmra.mxu0 %v699
      %v716 = vpop.f32.mrf.mxu0
      %v717 = vadd.f32 0.0, %v716
      %v718 = vpop.f32.mrf.mxu0
      %719 = vdwg.mxu0
      %720 = vmatpush.bf16.msra.mxu0 0
      %721 = vmatpush.bf16.msra.mxu0 0
      %722 = vmatpush.bf16.msra.mxu0 0
      %723 = vmatpush.bf16.msra.mxu0 0
      %724 = vmatpush.bf16.msra.mxu0 0
      %725 = vmatpush.bf16.msra.mxu0 0
      %726 = vmatpush.bf16.msra.mxu0 0
      %727 = vmatpush.bf16.msra.mxu0 %v705
      %728 = vmatmul.bf16.gmra.mxu0 %v699
      %v729 = vpop.f32.mrf.mxu0
      %v730 = vadd.f32 0.0, %v729
      %v731 = vpop.f32.mrf.mxu0
      %732 = vdwg.mxu0
      %v733 = vadd.f32 %v683, %v717
      %v734 = vadd.f32 %v684, %v730
      %s735 = scalar_lea.vmem %s3, 14
      %v736 = vld [vmem:[%s735] sm:$0x3]
      %v737 = vunpack.c.h.b16 %v319
      %v738 = vpack.c.b16 %v737, %v737
      %739 = vrot.lane.b32.xlu0 %v392, 112
      %v740 = vpop.permute.xlu0 %739
      %741 = vrot.lane.b32.xlu0 %v393, 112
      %v742 = vpop.permute.xlu0 %741
      %743 = vrot.lane.b32.xlu0 %v738, 112
      %v744 = vpop.permute.xlu0 %743
      %vm745 = vcmask 916480
      %v746 = vsel %vm745, %v740, %v742
      %v747 = vsel %vm745, %v742, %v744
      %v749 = vsel %vm403, %v736, 0
      %v752 = vsel %vm407, %v746, 0
      %v755 = vsel %vm407, %v747, 0
      %757 = vmatpush.bf16.msra.mxu0 0
      %758 = vmatpush.bf16.msra.mxu0 0
      %759 = vmatpush.bf16.msra.mxu0 0
      %760 = vmatpush.bf16.msra.mxu0 0
      %761 = vmatpush.bf16.msra.mxu0 0
      %762 = vmatpush.bf16.msra.mxu0 0
      %763 = vmatpush.bf16.msra.mxu0 0
      %764 = vmatpush.bf16.msra.mxu0 %v752
      %765 = vmatmul.bf16.gmra.mxu0 %v749
      %v766 = vpop.f32.mrf.mxu0
      %v767 = vadd.f32 0.0, %v766
      %v768 = vpop.f32.mrf.mxu0
      %769 = vdwg.mxu0
      %770 = vmatpush.bf16.msra.mxu0 0
      %771 = vmatpush.bf16.msra.mxu0 0
      %772 = vmatpush.bf16.msra.mxu0 0
      %773 = vmatpush.bf16.msra.mxu0 0
      %774 = vmatpush.bf16.msra.mxu0 0
      %775 = vmatpush.bf16.msra.mxu0 0
      %776 = vmatpush.bf16.msra.mxu0 0
      %777 = vmatpush.bf16.msra.mxu0 %v755
      %778 = vmatmul.bf16.gmra.mxu0 %v749
      %v779 = vpop.f32.mrf.mxu0
      %v780 = vadd.f32 0.0, %v779
      %v781 = vpop.f32.mrf.mxu0
      %782 = vdwg.mxu0
      %v783 = vadd.f32 %v733, %v767
      %v784 = vadd.f32 %v734, %v780
      %s785 = scalar_lea.vmem %s3, 16
      %v786 = vld [vmem:[%s785] sm:$0x3]
      %787 = vrot.lane.b32.xlu0 %v500, 111
      %v788 = vpop.permute.xlu0 %787
      %789 = vrot.lane.b32.xlu0 %v501, 111
      %v790 = vpop.permute.xlu0 %789
      %791 = vrot.lane.b32.xlu0 %v638, 111
      %v792 = vpop.permute.xlu0 %791
      %vm793 = vcmask 908288
      %v794 = vsel %vm793, %v788, %v790
      %v795 = vsel %vm793, %v790, %v792
      %v797 = vsel %vm403, %v786, 0
      %v800 = vsel %vm407, %v794, 0
      %v803 = vsel %vm407, %v795, 0
      %805 = vmatpush.bf16.msra.mxu0 0
      %806 = vmatpush.bf16.msra.mxu0 0
      %807 = vmatpush.bf16.msra.mxu0 0
      %808 = vmatpush.bf16.msra.mxu0 0
      %809 = vmatpush.bf16.msra.mxu0 0
      %810 = vmatpush.bf16.msra.mxu0 0
      %811 = vmatpush.bf16.msra.mxu0 0
      %812 = vmatpush.bf16.msra.mxu0 %v800
      %813 = vmatmul.bf16.gmra.mxu0 %v797
      %v814 = vpop.f32.mrf.mxu0
      %v815 = vadd.f32 0.0, %v814
      %v816 = vpop.f32.mrf.mxu0
      %817 = vdwg.mxu0
      %818 = vmatpush.bf16.msra.mxu0 0
      %819 = vmatpush.bf16.msra.mxu0 0
      %820 = vmatpush.bf16.msra.mxu0 0
      %821 = vmatpush.bf16.msra.mxu0 0
      %822 = vmatpush.bf16.msra.mxu0 0
      %823 = vmatpush.bf16.msra.mxu0 0
      %824 = vmatpush.bf16.msra.mxu0 0
      %825 = vmatpush.bf16.msra.mxu0 %v803
      %826 = vmatmul.bf16.gmra.mxu0 %v797
      %v827 = vpop.f32.mrf.mxu0
      %v828 = vadd.f32 0.0, %v827
      %v829 = vpop.f32.mrf.mxu0
      %830 = vdwg.mxu0
      %v831 = vadd.f32 %v783, %v815
      %v832 = vadd.f32 %v784, %v828
      %v833 = vld [vmem:[%s4] sm:$0xf]
      %835 = vset.pattern.permute.xlu0 0
      %836 = vperm.xlu0 %835, %v833
      %v837 = vpop.permute.xlu0 %836
      %v839 = vadd.f32 %v831, %v837
      %v840 = vadd.f32 %v832, %v837
      %v841 = vmax.f32 %v839, 0.0
      %v842 = vmax.f32 %v840, 0.0
      %vm843 = vcmask 1042296
      %844 = vst.msk [vmem:[#allocation3] sm:$0x3] %vm843, 0
      %vm845 = vcmask 132096
      %846 = vst.msk [vmem:[#allocation3 + $0x6] sm:$0x3] %vm845, 0
      %v847 = vpack.c.bf16 %v842, %v841
      %v849 = vrot.slane %v847, 2
      %vm850 = vcmask 1041408
      %v853 = vsel %vm850, %v847, %v849
      %855 = vst [vmem:[#allocation3 + $0x2] sm:$0xf] %v853
      %v856 = vld [vmem:[#allocation3] sm:$0xff]
      %857 = vst [vmem:[#allocation1] ss:$9 sm:$0xff] %v300
      %v858 = vld [vmem:[#allocation1] sm:$0xff]
      %v859 = vld [vmem:[#allocation1 + $0x9] sm:$0xff]
      %v860 = vld [vmem:[#allocation1 + $0x12] sm:$0xff]
      %v861 = vld [vmem:[#allocation1 + $0x1b] sm:$0xff]
      %v862 = vpack.i.b16 %v858, %v858
      %v864 = vperm.slane %v862, 0
      %v865 = vpack.i.b16 %v859, %v859
      %v867 = vperm.slane %v865, 0
      %v868 = vpack.i.b16 %v860, %v860
      %v870 = vperm.slane %v868, 0
      %v871 = vpack.i.b16 %v861, %v861
      %v873 = vperm.slane %v871, 0
      %v874 = vunpack.c.l.bf16 %v856
      %v875 = vunpack.c.h.bf16 %v856
      %v876 = vunpack.c.l.bf16 %v864
      %v877 = vunpack.c.l.bf16 %v867
      %v878 = vunpack.c.l.bf16 %v870
      %v879 = vunpack.c.l.bf16 %v873
      %v884 = vrot.slane %v877, 4
      %v885 = vrot.slane %v879, 4
      %v886 = vsel %vm407, %v876, %v884
      %v887 = vsel %vm407, %v878, %v885
      %v890 = vmul.f32 %v874, %v886
      %v891 = vmul.f32 %v875, %v887
      %894 = vst [vmem:[#allocation1] ss:$2 sm:$0xff] %v890
      %s895 = scalar_lea.vmem [#allocation1], 16
      %896 = vst [vmem:[%s895] ss:$2 sm:$0xff] %v891
      %v897 = vld.sshfl [vmem:[#allocation1] sm:$0xff pattern:$0x75316420]
      %v898 = vld.sshfl [vmem:[#allocation1 + $0x8] sm:$0xff pattern:$0x75316420]
      %v899 = vld.sshfl [vmem:[#allocation1 + $0x10] sm:$0xff pattern:$0x75316420]
      %v900 = vld.sshfl [vmem:[#allocation1 + $0x18] sm:$0xff pattern:$0x75316420]
      %v905 = vpack.c.bf16 %v898, %v897
      %v906 = vpack.c.bf16 %v900, %v899
      %907 = vst [vmem:[#allocation1] ss:$9 sm:$0xff] %v300
      %v908 = vld [vmem:[#allocation1] sm:$0xff]
      %v909 = vld [vmem:[#allocation1 + $0x9] sm:$0xff]
      %v910 = vld [vmem:[#allocation1 + $0x12] sm:$0xff]
      %v911 = vld [vmem:[#allocation1 + $0x1b] sm:$0xff]
      %v912 = vshrl.u32 %v908, 16
      %v913 = vpack.i.b16 %v912, %v912
      %v915 = vperm.slane %v913, 0
      %v916 = vshrl.u32 %v909, 16
      %v917 = vpack.i.b16 %v916, %v916
      %v919 = vperm.slane %v917, 0
      %v920 = vshrl.u32 %v910, 16
      %v921 = vpack.i.b16 %v920, %v920
      %v923 = vperm.slane %v921, 0
      %v924 = vshrl.u32 %v911, 16
      %v925 = vpack.i.b16 %v924, %v924
      %v927 = vperm.slane %v925, 0
      %v928 = vunpack.c.l.bf16 %v915
      %v929 = vunpack.c.l.bf16 %v919
      %v930 = vunpack.c.l.bf16 %v923
      %v931 = vunpack.c.l.bf16 %v927
      %v936 = vrot.slane %v929, 4
      %v937 = vrot.slane %v931, 4
      %v938 = vsel %vm407, %v928, %v936
      %v939 = vsel %vm407, %v930, %v937
      %v942 = vmul.f32 %v874, %v938
      %v943 = vmul.f32 %v875, %v939
      %946 = vst [vmem:[#allocation1] ss:$2 sm:$0xff] %v942
      %s947 = scalar_lea.vmem [#allocation1], 16
      %948 = vst [vmem:[%s947] ss:$2 sm:$0xff] %v943
      %v949 = vld.sshfl [vmem:[#allocation1] sm:$0xff pattern:$0x75316420]
      %v950 = vld.sshfl [vmem:[#allocation1 + $0x8] sm:$0xff pattern:$0x75316420]
      %v951 = vld.sshfl [vmem:[#allocation1 + $0x10] sm:$0xff pattern:$0x75316420]
      %v952 = vld.sshfl [vmem:[#allocation1 + $0x18] sm:$0xff pattern:$0x75316420]
      %v957 = vpack.c.bf16 %v950, %v949
      %v958 = vpack.c.bf16 %v952, %v951
      %v959 = vld [vmem:[%s5] sm:$0x3]
      %s960 = scalar_lea.vmem %s5, 2
      %v961 = vld [vmem:[%s960] sm:$0x3]
      %963 = vst [vmem:[#allocation1] ss:$4 sm:$0xff] %v856
      %v964 = vld.sshfl [vmem:[#allocation1] sm:$0xff pattern:$0x73625140]
      %v966 = vld.sshfl [vmem:[#allocation1 + $0x8] sm:$0xff pattern:$0x73625140]
      %v968 = vld.sshfl [vmem:[#allocation1 + $0x10] sm:$0xff pattern:$0x73625140]
      %970 = vrot.lane.b32.xlu0 %v964, 16
      %v971 = vpop.permute.xlu0 %970
      %972 = vrot.lane.b32.xlu0 %v966, 16
      %v973 = vpop.permute.xlu0 %972
      %974 = vrot.lane.b32.xlu0 %v968, 16
      %v975 = vpop.permute.xlu0 %974
      %v976 = vsel %vm400, %v971, %v973
      %v977 = vsel %vm400, %v973, %v975
      %vm978 = vcmask 31744
      %v980 = vsel %vm978, %v961, 0
      %v983 = vsel %vm850, %v976, 0
      %v986 = vsel %vm850, %v977, 0
      %988 = vmatpush.bf16.msra.mxu0 0
      %989 = vmatpush.bf16.msra.mxu0 0
      %990 = vmatpush.bf16.msra.mxu0 0
      %991 = vmatpush.bf16.msra.mxu0 0
      %992 = vmatpush.bf16.msra.mxu0 0
      %993 = vmatpush.bf16.msra.mxu0 0
      %994 = vmatpush.bf16.msra.mxu0 0
      %995 = vmatpush.bf16.msra.mxu0 %v983
      %996 = vmatmul.bf16.gmra.mxu0 %v980
      %v997 = vpop.f32.mrf.mxu0
      %v998 = vadd.f32 0.0, %v997
      %v999 = vpop.f32.mrf.mxu0
      %1000 = vdwg.mxu0
      %1001 = vmatpush.bf16.msra.mxu0 0
      %1002 = vmatpush.bf16.msra.mxu0 0
      %1003 = vmatpush.bf16.msra.mxu0 0
      %1004 = vmatpush.bf16.msra.mxu0 0
      %1005 = vmatpush.bf16.msra.mxu0 0
      %1006 = vmatpush.bf16.msra.mxu0 0
      %1007 = vmatpush.bf16.msra.mxu0 0
      %1008 = vmatpush.bf16.msra.mxu0 %v986
      %1009 = vmatmul.bf16.gmra.mxu0 %v980
      %v1010 = vpop.f32.mrf.mxu0
      %v1011 = vadd.f32 0.0, %v1010
      %v1012 = vpop.f32.mrf.mxu0
      %1013 = vdwg.mxu0
      %v1016 = vunpack.c.l.b16 %v905
      %v1017 = vunpack.c.h.b16 %v905
      %v1018 = vunpack.c.l.b16 %v906
      %v1019 = vpack.c.b16 %v1016, %v1016
      %v1020 = vpack.c.b16 %v1017, %v1017
      %v1021 = vpack.c.b16 %v1018, %v1018
      %1022 = vrot.lane.b32.xlu0 %v1019, 17
      %v1023 = vpop.permute.xlu0 %1022
      %1024 = vrot.lane.b32.xlu0 %v1020, 17
      %v1025 = vpop.permute.xlu0 %1024
      %1026 = vrot.lane.b32.xlu0 %v1021, 17
      %v1027 = vpop.permute.xlu0 %1026
      %v1028 = vsel %vm454, %v1023, %v1025
      %v1029 = vsel %vm454, %v1025, %v1027
      %v1031 = vsel %vm978, %v959, 0
      %v1034 = vsel %vm850, %v1028, 0
      %v1037 = vsel %vm850, %v1029, 0
      %1039 = vmatpush.bf16.msra.mxu0 0
      %1040 = vmatpush.bf16.msra.mxu0 0
      %1041 = vmatpush.bf16.msra.mxu0 0
      %1042 = vmatpush.bf16.msra.mxu0 0
      %1043 = vmatpush.bf16.msra.mxu0 0
      %1044 = vmatpush.bf16.msra.mxu0 0
      %1045 = vmatpush.bf16.msra.mxu0 0
      %1046 = vmatpush.bf16.msra.mxu0 %v1034
      %1047 = vmatmul.bf16.gmra.mxu0 %v1031
      %v1048 = vpop.f32.mrf.mxu0
      %v1049 = vadd.f32 %v998, %v1048
      %v1050 = vpop.f32.mrf.mxu0
      %1051 = vdwg.mxu0
      %1052 = vmatpush.bf16.msra.mxu0 0
      %1053 = vmatpush.bf16.msra.mxu0 0
      %1054 = vmatpush.bf16.msra.mxu0 0
      %1055 = vmatpush.bf16.msra.mxu0 0
      %1056 = vmatpush.bf16.msra.mxu0 0
      %1057 = vmatpush.bf16.msra.mxu0 0
      %1058 = vmatpush.bf16.msra.mxu0 0
      %1059 = vmatpush.bf16.msra.mxu0 %v1037
      %1060 = vmatmul.bf16.gmra.mxu0 %v1031
      %v1061 = vpop.f32.mrf.mxu0
      %v1062 = vadd.f32 %v1011, %v1061
      %v1063 = vpop.f32.mrf.mxu0
      %1064 = vdwg.mxu0
      %s1065 = scalar_lea.vmem %s5, 4
      %v1066 = vld [vmem:[%s1065] sm:$0x3]
      %v1069 = vunpack.c.l.b16 %v957
      %v1070 = vunpack.c.h.b16 %v957
      %v1071 = vunpack.c.l.b16 %v958
      %v1072 = vpack.c.b16 %v1069, %v1069
      %v1073 = vpack.c.b16 %v1070, %v1070
      %v1074 = vpack.c.b16 %v1071, %v1071
      %1075 = vrot.lane.b32.xlu0 %v1072, 15
      %v1076 = vpop.permute.xlu0 %1075
      %1077 = vrot.lane.b32.xlu0 %v1073, 15
      %v1078 = vpop.permute.xlu0 %1077
      %1079 = vrot.lane.b32.xlu0 %v1074, 15
      %v1080 = vpop.permute.xlu0 %1079
      %v1081 = vsel %vm508, %v1076, %v1078
      %v1082 = vsel %vm508, %v1078, %v1080
      %v1084 = vsel %vm978, %v1066, 0
      %v1087 = vsel %vm850, %v1081, 0
      %v1090 = vsel %vm850, %v1082, 0
      %1092 = vmatpush.bf16.msra.mxu0 0
      %1093 = vmatpush.bf16.msra.mxu0 0
      %1094 = vmatpush.bf16.msra.mxu0 0
      %1095 = vmatpush.bf16.msra.mxu0 0
      %1096 = vmatpush.bf16.msra.mxu0 0
      %1097 = vmatpush.bf16.msra.mxu0 0
      %1098 = vmatpush.bf16.msra.mxu0 0
      %1099 = vmatpush.bf16.msra.mxu0 %v1087
      %1100 = vmatmul.bf16.gmra.mxu0 %v1084
      %v1101 = vpop.f32.mrf.mxu0
      %v1102 = vadd.f32 0.0, %v1101
      %v1103 = vpop.f32.mrf.mxu0
      %1104 = vdwg.mxu0
      %1105 = vmatpush.bf16.msra.mxu0 0
      %1106 = vmatpush.bf16.msra.mxu0 0
      %1107 = vmatpush.bf16.msra.mxu0 0
      %1108 = vmatpush.bf16.msra.mxu0 0
      %1109 = vmatpush.bf16.msra.mxu0 0
      %1110 = vmatpush.bf16.msra.mxu0 0
      %1111 = vmatpush.bf16.msra.mxu0 0
      %1112 = vmatpush.bf16.msra.mxu0 %v1090
      %1113 = vmatmul.bf16.gmra.mxu0 %v1084
      %v1114 = vpop.f32.mrf.mxu0
      %v1115 = vadd.f32 0.0, %v1114
      %v1116 = vpop.f32.mrf.mxu0
      %1117 = vdwg.mxu0
      %v1118 = vadd.f32 %v1049, %v1102
      %v1119 = vadd.f32 %v1062, %v1115
      %s1120 = scalar_lea.vmem %s5, 6
      %v1121 = vld [vmem:[%s1120] sm:$0x3]
      %1122 = vrot.lane.b32.xlu0 %v1019, 1
      %v1123 = vpop.permute.xlu0 %1122
      %1124 = vrot.lane.b32.xlu0 %v1020, 1
      %v1125 = vpop.permute.xlu0 %1124
      %1126 = vrot.lane.b32.xlu0 %v1021, 1
      %v1127 = vpop.permute.xlu0 %1126
      %v1128 = vsel %vm556, %v1123, %v1125
      %v1129 = vsel %vm556, %v1125, %v1127
      %v1131 = vsel %vm978, %v1121, 0
      %v1134 = vsel %vm850, %v1128, 0
      %v1137 = vsel %vm850, %v1129, 0
      %1139 = vmatpush.bf16.msra.mxu0 0
      %1140 = vmatpush.bf16.msra.mxu0 0
      %1141 = vmatpush.bf16.msra.mxu0 0
      %1142 = vmatpush.bf16.msra.mxu0 0
      %1143 = vmatpush.bf16.msra.mxu0 0
      %1144 = vmatpush.bf16.msra.mxu0 0
      %1145 = vmatpush.bf16.msra.mxu0 0
      %1146 = vmatpush.bf16.msra.mxu0 %v1134
      %1147 = vmatmul.bf16.gmra.mxu0 %v1131
      %v1148 = vpop.f32.mrf.mxu0
      %v1149 = vadd.f32 0.0, %v1148
      %v1150 = vpop.f32.mrf.mxu0
      %1151 = vdwg.mxu0
      %1152 = vmatpush.bf16.msra.mxu0 0
      %1153 = vmatpush.bf16.msra.mxu0 0
      %1154 = vmatpush.bf16.msra.mxu0 0
      %1155 = vmatpush.bf16.msra.mxu0 0
      %1156 = vmatpush.bf16.msra.mxu0 0
      %1157 = vmatpush.bf16.msra.mxu0 0
      %1158 = vmatpush.bf16.msra.mxu0 0
      %1159 = vmatpush.bf16.msra.mxu0 %v1137
      %1160 = vmatmul.bf16.gmra.mxu0 %v1131
      %v1161 = vpop.f32.mrf.mxu0
      %v1162 = vadd.f32 0.0, %v1161
      %v1163 = vpop.f32.mrf.mxu0
      %1164 = vdwg.mxu0
      %v1165 = vadd.f32 %v1118, %v1149
      %v1166 = vadd.f32 %v1119, %v1162
      %s1167 = scalar_lea.vmem %s5, 8
      %v1168 = vld [vmem:[%s1167] sm:$0x3]
      %1169 = vst [vmem:[#allocation1] ss:$4 sm:$0xff] %v856
      %v1170 = vld.sshfl [vmem:[#allocation1 + $0x8] sm:$0xff pattern:$0x73625140]
      %v1171 = vld.sshfl [vmem:[#allocation1 + $0x10] sm:$0xff pattern:$0x73625140]
      %v1173 = vsel %vm978, %v1168, 0
      %v1175 = vsel %vm850, %v1170, 0
      %v1177 = vsel %vm850, %v1171, 0
      %1179 = vmatpush.bf16.msra.mxu0 0
      %1180 = vmatpush.bf16.msra.mxu0 0
      %1181 = vmatpush.bf16.msra.mxu0 0
      %1182 = vmatpush.bf16.msra.mxu0 0
      %1183 = vmatpush.bf16.msra.mxu0 0
      %1184 = vmatpush.bf16.msra.mxu0 0
      %1185 = vmatpush.bf16.msra.mxu0 0
      %1186 = vmatpush.bf16.msra.mxu0 %v1175
      %1187 = vmatmul.bf16.gmra.mxu0 %v1173
      %v1188 = vpop.f32.mrf.mxu0
      %v1189 = vadd.f32 0.0, %v1188
      %v1190 = vpop.f32.mrf.mxu0
      %1191 = vdwg.mxu0
      %1192 = vmatpush.bf16.msra.mxu0 0
      %1193 = vmatpush.bf16.msra.mxu0 0
      %1194 = vmatpush.bf16.msra.mxu0 0
      %1195 = vmatpush.bf16.msra.mxu0 0
      %1196 = vmatpush.bf16.msra.mxu0 0
      %1197 = vmatpush.bf16.msra.mxu0 0
      %1198 = vmatpush.bf16.msra.mxu0 0
      %1199 = vmatpush.bf16.msra.mxu0 %v1177
      %1200 = vmatmul.bf16.gmra.mxu0 %v1173
      %v1201 = vpop.f32.mrf.mxu0
      %v1202 = vadd.f32 0.0, %v1201
      %v1203 = vpop.f32.mrf.mxu0
      %1204 = vdwg.mxu0
      %v1205 = vadd.f32 %v1165, %v1189
      %v1206 = vadd.f32 %v1166, %v1202
      %s1207 = scalar_lea.vmem %s5, 10
      %v1208 = vld [vmem:[%s1207] sm:$0x3]
      %v1209 = vunpack.c.h.b16 %v958
      %v1210 = vpack.c.b16 %v1209, %v1209
      %1211 = vrot.lane.b32.xlu0 %v1073, 127
      %v1212 = vpop.permute.xlu0 %1211
      %1213 = vrot.lane.b32.xlu0 %v1074, 127
      %v1214 = vpop.permute.xlu0 %1213
      %1215 = vrot.lane.b32.xlu0 %v1210, 127
      %v1216 = vpop.permute.xlu0 %1215
      %v1217 = vsel %vm645, %v1212, %v1214
      %v1218 = vsel %vm645, %v1214, %v1216
      %v1220 = vsel %vm978, %v1208, 0
      %v1223 = vsel %vm850, %v1217, 0
      %v1226 = vsel %vm850, %v1218, 0
      %1228 = vmatpush.bf16.msra.mxu0 0
      %1229 = vmatpush.bf16.msra.mxu0 0
      %1230 = vmatpush.bf16.msra.mxu0 0
      %1231 = vmatpush.bf16.msra.mxu0 0
      %1232 = vmatpush.bf16.msra.mxu0 0
      %1233 = vmatpush.bf16.msra.mxu0 0
      %1234 = vmatpush.bf16.msra.mxu0 0
      %1235 = vmatpush.bf16.msra.mxu0 %v1223
      %1236 = vmatmul.bf16.gmra.mxu0 %v1220
      %v1237 = vpop.f32.mrf.mxu0
      %v1238 = vadd.f32 0.0, %v1237
      %v1239 = vpop.f32.mrf.mxu0
      %1240 = vdwg.mxu0
      %1241 = vmatpush.bf16.msra.mxu0 0
      %1242 = vmatpush.bf16.msra.mxu0 0
      %1243 = vmatpush.bf16.msra.mxu0 0
      %1244 = vmatpush.bf16.msra.mxu0 0
      %1245 = vmatpush.bf16.msra.mxu0 0
      %1246 = vmatpush.bf16.msra.mxu0 0
      %1247 = vmatpush.bf16.msra.mxu0 0
      %1248 = vmatpush.bf16.msra.mxu0 %v1226
      %1249 = vmatmul.bf16.gmra.mxu0 %v1220
      %v1250 = vpop.f32.mrf.mxu0
      %v1251 = vadd.f32 0.0, %v1250
      %v1252 = vpop.f32.mrf.mxu0
      %1253 = vdwg.mxu0
      %v1254 = vadd.f32 %v1205, %v1238
      %v1255 = vadd.f32 %v1206, %v1251
      %s1256 = scalar_lea.vmem %s5, 12
      %v1257 = vld [vmem:[%s1256] sm:$0x3]
      %v1258 = vunpack.c.h.b16 %v906
      %v1259 = vpack.c.b16 %v1258, %v1258
      %1260 = vrot.lane.b32.xlu0 %v1020, 113
      %v1261 = vpop.permute.xlu0 %1260
      %1262 = vrot.lane.b32.xlu0 %v1021, 113
      %v1263 = vpop.permute.xlu0 %1262
      %1264 = vrot.lane.b32.xlu0 %v1259, 113
      %v1265 = vpop.permute.xlu0 %1264
      %v1266 = vsel %vm695, %v1261, %v1263
      %v1267 = vsel %vm695, %v1263, %v1265
      %v1269 = vsel %vm978, %v1257, 0
      %v1272 = vsel %vm850, %v1266, 0
      %v1275 = vsel %vm850, %v1267, 0
      %1277 = vmatpush.bf16.msra.mxu0 0
      %1278 = vmatpush.bf16.msra.mxu0 0
      %1279 = vmatpush.bf16.msra.mxu0 0
      %1280 = vmatpush.bf16.msra.mxu0 0
      %1281 = vmatpush.bf16.msra.mxu0 0
      %1282 = vmatpush.bf16.msra.mxu0 0
      %1283 = vmatpush.bf16.msra.mxu0 0
      %1284 = vmatpush.bf16.msra.mxu0 %v1272
      %1285 = vmatmul.bf16.gmra.mxu0 %v1269
      %v1286 = vpop.f32.mrf.mxu0
      %v1287 = vadd.f32 0.0, %v1286
      %v1288 = vpop.f32.mrf.mxu0
      %1289 = vdwg.mxu0
      %1290 = vmatpush.bf16.msra.mxu0 0
      %1291 = vmatpush.bf16.msra.mxu0 0
      %1292 = vmatpush.bf16.msra.mxu0 0
      %1293 = vmatpush.bf16.msra.mxu0 0
      %1294 = vmatpush.bf16.msra.mxu0 0
      %1295 = vmatpush.bf16.msra.mxu0 0
      %1296 = vmatpush.bf16.msra.mxu0 0
      %1297 = vmatpush.bf16.msra.mxu0 %v1275
      %1298 = vmatmul.bf16.gmra.mxu0 %v1269
      %v1299 = vpop.f32.mrf.mxu0
      %v1300 = vadd.f32 0.0, %v1299
      %v1301 = vpop.f32.mrf.mxu0
      %1302 = vdwg.mxu0
      %v1303 = vadd.f32 %v1254, %v1287
      %v1304 = vadd.f32 %v1255, %v1300
      %s1305 = scalar_lea.vmem %s5, 14
      %v1306 = vld [vmem:[%s1305] sm:$0x3]
      %1307 = vst [vmem:[#allocation1] ss:$4 sm:$0xff] %v856
      %v1308 = vld.sshfl [vmem:[#allocation1 + $0x8] sm:$0xff pattern:$0x73625140]
      %v1310 = vld.sshfl [vmem:[#allocation1 + $0x10] sm:$0xff pattern:$0x73625140]
      %v1312 = vld.sshfl [vmem:[#allocation1 + $0x18] sm:$0xff pattern:$0x73625140]
      %1314 = vrot.lane.b32.xlu0 %v1308, 112
      %v1315 = vpop.permute.xlu0 %1314
      %1316 = vrot.lane.b32.xlu0 %v1310, 112
      %v1317 = vpop.permute.xlu0 %1316
      %1318 = vrot.lane.b32.xlu0 %v1312, 112
      %v1319 = vpop.permute.xlu0 %1318
      %v1320 = vsel %vm745, %v1315, %v1317
      %v1321 = vsel %vm745, %v1317, %v1319
      %v1323 = vsel %vm978, %v1306, 0
      %v1326 = vsel %vm850, %v1320, 0
      %v1329 = vsel %vm850, %v1321, 0
      %1331 = vmatpush.bf16.msra.mxu0 0
      %1332 = vmatpush.bf16.msra.mxu0 0
      %1333 = vmatpush.bf16.msra.mxu0 0
      %1334 = vmatpush.bf16.msra.mxu0 0
      %1335 = vmatpush.bf16.msra.mxu0 0
      %1336 = vmatpush.bf16.msra.mxu0 0
      %1337 = vmatpush.bf16.msra.mxu0 0
      %1338 = vmatpush.bf16.msra.mxu0 %v1326
      %1339 = vmatmul.bf16.gmra.mxu0 %v1323
      %v1340 = vpop.f32.mrf.mxu0
      %v1341 = vadd.f32 0.0, %v1340
      %v1342 = vpop.f32.mrf.mxu0
      %1343 = vdwg.mxu0
      %1344 = vmatpush.bf16.msra.mxu0 0
      %1345 = vmatpush.bf16.msra.mxu0 0
      %1346 = vmatpush.bf16.msra.mxu0 0
      %1347 = vmatpush.bf16.msra.mxu0 0
      %1348 = vmatpush.bf16.msra.mxu0 0
      %1349 = vmatpush.bf16.msra.mxu0 0
      %1350 = vmatpush.bf16.msra.mxu0 0
      %1351 = vmatpush.bf16.msra.mxu0 %v1329
      %1352 = vmatmul.bf16.gmra.mxu0 %v1323
      %v1353 = vpop.f32.mrf.mxu0
      %v1354 = vadd.f32 0.0, %v1353
      %v1355 = vpop.f32.mrf.mxu0
      %1356 = vdwg.mxu0
      %v1357 = vadd.f32 %v1303, %v1341
      %v1358 = vadd.f32 %v1304, %v1354
      %s1359 = scalar_lea.vmem %s5, 16
      %v1360 = vld [vmem:[%s1359] sm:$0x3]
      %1361 = vrot.lane.b32.xlu0 %v1073, 111
      %v1362 = vpop.permute.xlu0 %1361
      %1363 = vrot.lane.b32.xlu0 %v1074, 111
      %v1364 = vpop.permute.xlu0 %1363
      %1365 = vrot.lane.b32.xlu0 %v1210, 111
      %v1366 = vpop.permute.xlu0 %1365
      %v1367 = vsel %vm793, %v1362, %v1364
      %v1368 = vsel %vm793, %v1364, %v1366
      %v1370 = vsel %vm978, %v1360, 0
      %v1373 = vsel %vm850, %v1367, 0
      %v1376 = vsel %vm850, %v1368, 0
      %1378 = vmatpush.bf16.msra.mxu0 0
      %1379 = vmatpush.bf16.msra.mxu0 0
      %1380 = vmatpush.bf16.msra.mxu0 0
      %1381 = vmatpush.bf16.msra.mxu0 0
      %1382 = vmatpush.bf16.msra.mxu0 0
      %1383 = vmatpush.bf16.msra.mxu0 0
      %1384 = vmatpush.bf16.msra.mxu0 0
      %1385 = vmatpush.bf16.msra.mxu0 %v1373
      %1386 = vmatmul.bf16.gmra.mxu0 %v1370
      %v1387 = vpop.f32.mrf.mxu0
      %v1388 = vadd.f32 0.0, %v1387
      %v1389 = vpop.f32.mrf.mxu0
      %1390 = vdwg.mxu0
      %1391 = vmatpush.bf16.msra.mxu0 0
      %1392 = vmatpush.bf16.msra.mxu0 0
      %1393 = vmatpush.bf16.msra.mxu0 0
      %1394 = vmatpush.bf16.msra.mxu0 0
      %1395 = vmatpush.bf16.msra.mxu0 0
      %1396 = vmatpush.bf16.msra.mxu0 0
      %1397 = vmatpush.bf16.msra.mxu0 0
      %1398 = vmatpush.bf16.msra.mxu0 %v1376
      %1399 = vmatmul.bf16.gmra.mxu0 %v1370
      %v1400 = vpop.f32.mrf.mxu0
      %v1401 = vadd.f32 0.0, %v1400
      %v1402 = vpop.f32.mrf.mxu0
      %1403 = vdwg.mxu0
      %v1404 = vadd.f32 %v1357, %v1388
      %v1405 = vadd.f32 %v1358, %v1401
      %v1406 = vld [vmem:[%s6] sm:$0xf]
      %1408 = vset.pattern.permute.xlu0 0
      %1409 = vperm.xlu0 %1408, %v1406
      %v1410 = vpop.permute.xlu0 %1409
      %v1412 = vadd.f32 %v1404, %v1410
      %v1413 = vadd.f32 %v1405, %v1410
      %v1414 = vmax.f32 %v1412, 0.0
      %v1415 = vmax.f32 %v1413, 0.0
      %v1418 = vrot.slane %v1415, 4
      %v1419 = vsel %vm407, %v1414, %v1418
      %1421 = vst [vmem:[%s298] sm:$0xff] %v1419
      %p1422 = scmp.lt.s32.totalorder %s18, 1
      %s1423 = scalar_select %p1422, %s18, 1
      %s1424 = smul.addr %s1423, 2
      %s1425 = smul.addr %s1424, 4
      %s1426 = scalar_lea.vmem %s7, %s1425
      // Predicated region
      $region49: #{up_forward.1} parent=47 // pred_check
        %p1427 = pneg %p193
      $region50: #{up_forward.1} parent=47 // pred_check_branch
        %1429 = sbr.rel (%p1427) target = $region52
      $region51: #{up_forward.1} parent=47 // pred_region
        _
      $region52: #{up_forward.1} parent=47 // pred_fallthru
        _
    $region48: #{up_forward.1} parent=5 // pred_fallthru
      _
    %p1430 = scmp.le.s32.totalorder 2, %s13
    // Predicated region
    $region53: #{up_forward.1} parent=5 // pred_check
      %p1431 = pneg %p1430
    $region54: #{up_forward.1} parent=5 // pred_check_branch
      %1433 = sbr.rel (%p1431) target = $region56
    $region55: #{up_forward.1} parent=5 // pred_region
      %s1434 = ssub.s32 %s13, 2
      // Predicated region
      $region57: #{up_forward.1} parent=55 // pred_check
        %p1435 = pneg %p199
      $region58: #{up_forward.1} parent=55 // pred_check_branch
        %1437 = sbr.rel (%p1435) target = $region60
      $region59: #{up_forward.1} parent=55 // pred_region
        %p1438 = scmp.lt.s32.totalorder %s19, 1
        %s1439 = scalar_select %p1438, %s19, 1
        %s1440 = smul.addr %s1439, 2
        %s1441 = smul.addr %s1440, 4
        %s1442 = scalar_lea.vmem %s7, %s1441
      $region60: #{up_forward.1} parent=55 // pred_fallthru
        _
    $region56: #{up_forward.1} parent=5 // pred_fallthru
      _
  $region6: #{up_forward.1} parent=0 // loop_footer
    %s17 = sadd.s32 1, %s13
  $region7: #{up_forward.1} parent=0 // loop_footer_branch
    %12 = sbr.rel target = $region3
  $region8: #{up_forward.1} parent=0 // loop_exit
    _

</llo_original>
